<compile_context>
chip_gen: v5e
topology: v5e:2x2
jax: 0.10.0
libtpu: 0.0.40
codegen_flags: <defaults>
</compile_context>

<pallas_src>
import jax
import jax.numpy as jnp
from jax import lax
from jax.experimental import pallas as pl
from jax.experimental.pallas import tpu as pltpu


# ----------------------------------------------------------------------------
# Fused kernel: upconv -> (concat) -> conv1+bn1+relu -> conv2+bn2+relu.
# ----------------------------------------------------------------------------
def _decoder_kernel(x_ref, skip_ref, g_ref, bup_ref, w1_ref, bias1_ref,
                    w2_ref, bias2_ref, out_ref):
    bt, h_lo, xw = x_ref.shape
    m = bt * h_lo
    sw = skip_ref.shape[-1] // 2          # W_hi * C_skip  (one plane)
    uw = g_ref.shape[-1] // 2             # W_hi * C_out   (one plane)
    ow = out_ref.shape[-1] // 2           # W_hi * C_out   (one plane)

    # Per-image low-res row index; images are stacked along the M/sublane axis,
    # so the +/-1 row shifts only need masking at each image's first/last row
    # (replaces the old halo scratch zero-fill/store/load round trip).
    row = lax.broadcasted_iota(jnp.int32, (m, 1), 0) % h_lo
    top = row == 0
    bot = row == (h_lo - 1)

    def shift_dn(p):                      # result[r] = p[r-1]; 0 at image row 0
        s = jnp.concatenate([p[:1], p[:-1]], axis=0)
        return jnp.where(top, jnp.zeros_like(s), s)

    def shift_up(p):                      # result[r] = p[r+1]; 0 at last image row
        s = jnp.concatenate([p[1:], p[-1:]], axis=0)
        return jnp.where(bot, jnp.zeros_like(s), s)

    # --- ConvTranspose2d(k=2, s=2): ONE (M, xw) @ (xw, 2*uw) MXU matmul that
    # emits both hi-res row planes along lanes.
    xr = x_ref[...].reshape(m, xw)                              # bf16
    u = jnp.dot(xr, g_ref[...], preferred_element_type=jnp.float32)
    u = (u + bup_ref[...]).astype(jnp.bfloat16)                 # [plane0 | plane1]
    u0, u1 = u[:, :uw], u[:, uw:]

    s = skip_ref[...].reshape(m, 2 * sw)                        # bf16 [plane0 | plane1]
    s0, s1 = s[:, :sw], s[:, sw:]

    # --- Conv1 + BN1 + ReLU: all 3 row taps and both K-groups (upconv, skip)
    # fused into ONE matmul; the torch.cat([up, skip], dim=1) is a K-group split
    # of w1, so no fp32 activation concat / HBM intermediate is ever built.
    a1 = jnp.concatenate(
        [u, shift_dn(u1), shift_up(u0), s, shift_dn(s1), shift_up(s0)], axis=1)
    h = jnp.dot(a1, w1_ref[...], preferred_element_type=jnp.float32)
    h = jnp.maximum(h + bias1_ref[...], 0.0).astype(jnp.bfloat16)
    h0, h1 = h[:, :ow], h[:, ow:]

    # --- Conv2 + BN2 + ReLU: one matmul, N = 2*W_hi*Cout (lane-dense output).
    a2 = jnp.concatenate([h, shift_dn(h1), shift_up(h0)], axis=1)
    o = jnp.dot(a2, w2_ref[...], preferred_element_type=jnp.float32)
    o = jnp.maximum(o + bias2_ref[...], 0.0)

    out_ref[...] = o.reshape(bt, h_lo, 2 * ow).astype(out_ref.dtype)


# ----------------------------------------------------------------------------
# Host-side weight preparation (banded matrices, tap/K-group fusion, BN folding).
# ----------------------------------------------------------------------------
def _banded_conv3(w_hwio, width):
    """(3,3,Ci,Co) 'same' 3x3 conv -> (3, width*Ci, width*Co) banded matrices.

    mats[t][(w+dx-1)*Ci + ci, w*Co + co] = w_hwio[t, dx, ci, co]
    (horizontal taps + 'same' zero padding folded in; t = kernel row)
    """
    kh, kw, _, _ = w_hwio.shape
    mats = []
    for t in range(kh):
        bt = None
        for dx in range(kw):
            off = dx - kw // 2
            shift = jnp.eye(width, k=-off, dtype=jnp.float32)   # S[w+off, w] = 1
            contrib = jnp.kron(shift, w_hwio[t, dx])
            bt = contrib if bt is None else bt + contrib
        mats.append(bt)
    return jnp.stack(mats, axis=0)


def _fused_conv3_weight(b):
    """(3, Kf, Nf) per-row-tap banded mats -> (4*Kf, 2*Nf) fused weight.

    LHS K-group order  : [p0, p1, dn(p1), up(p0)]  (even/odd low-res row planes)
    output column order: [plane0 (hi-res rows 2i) | plane1 (hi-res rows 2i+1)]
    """
    z = jnp.zeros_like(b[0])
    col0 = jnp.concatenate([b[1], b[2], b[0], z], axis=0)   # hi-res rows 2i
    col1 = jnp.concatenate([b[0], b[1], z, b[2]], axis=0)   # hi-res rows 2i+1
    return jnp.concatenate([col0, col1], axis=1)


def _banded_upconv(w_up, w_lo):
    """(Cin,2,2,Co) k2s2 transposed conv -> (2, w_lo*Cin, 2*w_lo*Co) matrices.

    g[dy][j*Cin + ci, (2j+dx)*Co + co] = w_up[ci, dy, dx, co]
    """
    w_hi = 2 * w_lo
    mats = []
    for dy in range(2):
        g = None
        for dx in range(2):
            sel = jnp.zeros((w_lo, w_hi), jnp.float32)
            sel = sel.at[jnp.arange(w_lo), 2 * jnp.arange(w_lo) + dx].set(1.0)
            contrib = jnp.kron(sel, w_up[:, dy, dx, :])
            g = contrib if g is None else g + contrib
        mats.append(g)
    return jnp.stack(mats, axis=0)


def prepare_kernel_params(params, w_lo, eps=1e-5):
    """Fold BN (inference) into bf16 banded matmul weights; keep biases fp32."""
    w_hi = 2 * w_lo
    co = params["w_up"].shape[-1]

    s1 = params["g1"] / jnp.sqrt(params["v1"] + eps)
    bias1 = (params["b1"] - params["m1"]) * s1 + params["be1"]
    s2 = params["g2"] / jnp.sqrt(params["v2"] + eps)
    bias2 = (params["b2"] - params["m2"]) * s2 + params["be2"]
    w1s = params["w1"] * s1
    w2s = params["w2"] * s2

    # conv1: K-group split over the [upconv, skip] channel concat (up channels first).
    w1 = jnp.concatenate(
        [_fused_conv3_weight(_banded_conv3(w1s[:, :, :co, :], w_hi)),
         _fused_conv3_weight(_banded_conv3(w1s[:, :, co:, :], w_hi))], axis=0)
    w2 = _fused_conv3_weight(_banded_conv3(w2s, w_hi))

    g = _banded_upconv(params["w_up"], w_lo)          # (2, W_lo*Cin, W_hi*Cout)
    g = jnp.concatenate([g[0], g[1]], axis=1)         # both planes: N = 2*W_hi*Cout

    return {
        "g": g.astype(jnp.bfloat16),
        "bup": jnp.tile(params["b_up"], 2 * w_hi)[None, :].astype(jnp.float32),
        "w1": w1.astype(jnp.bfloat16),
        "bias1": jnp.tile(bias1, 2 * w_hi)[None, :].astype(jnp.float32),
        "w2": w2.astype(jnp.bfloat16),
        "bias2": jnp.tile(bias2, 2 * w_hi)[None, :].astype(jnp.float32),
    }


# ----------------------------------------------------------------------------
# Pallas forward pass.
# ----------------------------------------------------------------------------
def decoder_block_pallas(x_nchw, skip_nchw, kp, *, batch_tile=None):
    # Layout assumptions (documented, asserted by the demo sizes):
    #   W_lo*Cin, W_hi*Cskip, W_hi*Cout multiples of 128; H_lo multiple of 8.
    n, cin, h_lo, w_lo = x_nchw.shape
    _, cs, h_hi, w_hi = skip_nchw.shape
    xw = w_lo * cin
    sw = w_hi * cs
    ow2 = kp["w2"].shape[-1]               # 2 * W_hi * Cout
    ow = ow2 // 2
    cout = ow // w_hi

    if batch_tile is None:
        # Target M = batch_tile * H_lo >= 128 MXU rows, without exceeding batch.
        batch_tile = max(1, min(n, pl.cdiv(128, h_lo)))
        while n % batch_tile:
            batch_tile -= 1
    grid = (n // batch_tile,)

    # NCHW -> row-flattened layout, even/odd hi-res rows packed along lanes,
    # bf16 matmul inputs (layout plumbing only; same rounding as an in-kernel cast).
    xh = jnp.transpose(x_nchw, (0, 2, 3, 1)).reshape(n, h_lo, xw).astype(jnp.bfloat16)
    sk = jnp.transpose(skip_nchw, (0, 2, 3, 1)).reshape(n, h_lo, 2 * sw).astype(jnp.bfloat16)

    out = pl.pallas_call(
        _decoder_kernel,
        out_shape=jax.ShapeDtypeStruct((n, h_lo, ow2), jnp.float32),
        grid=grid,
        in_specs=[
            pl.BlockSpec((batch_tile, h_lo, xw), lambda i: (i, 0, 0)),
            pl.BlockSpec((batch_tile, h_lo, 2 * sw), lambda i: (i, 0, 0)),
            # grid-constant weights / biases (fetched once, never re-indexed):
            pl.BlockSpec(kp["g"].shape, lambda i: (0, 0)),
            pl.BlockSpec(kp["bup"].shape, lambda i: (0, 0)),
            pl.BlockSpec(kp["w1"].shape, lambda i: (0, 0)),
            pl.BlockSpec(kp["bias1"].shape, lambda i: (0, 0)),
            pl.BlockSpec(kp["w2"].shape, lambda i: (0, 0)),
            pl.BlockSpec(kp["bias2"].shape, lambda i: (0, 0)),
        ],
        out_specs=pl.BlockSpec((batch_tile, h_lo, ow2), lambda i: (i, 0, 0)),
        compiler_params=pltpu.CompilerParams(
            dimension_semantics=("parallel",),
            vmem_limit_bytes=32 * 1024 * 1024),
    )(xh, sk, kp["g"], kp["bup"], kp["w1"], kp["bias1"], kp["w2"], kp["bias2"])

    # (n, H_lo, [plane0|plane1]) reshapes straight to NHWC (planes interleave as
    # hi-res rows 2i / 2i+1), then back to NCHW.
    y = out.reshape(n, h_hi, w_hi, cout)
    return jnp.transpose(y, (0, 3, 1, 2))


# ----------------------------------------------------------------------------
# Pure-JAX reference (same math, different code path) for a sanity check.
# ----------------------------------------------------------------------------
def _conv_bn_relu_ref(x, w, b, gamma, beta, mean, var, eps=1e-5):
    y = lax.conv_general_dilated(
        x, w, window_strides=(1, 1), padding="SAME",
        dimension_numbers=("NHWC", "HWIO", "NHWC")) + b
    y = (y - mean) * (gamma / jnp.sqrt(var + eps)) + beta
    return jnp.maximum(y, 0.0)


def decoder_block_ref(x_nchw, skip_nchw, p):
    x = jnp.transpose(x_nchw, (0, 2, 3, 1))
    sk = jnp.transpose(skip_nchw, (0, 2, 3, 1))
    n, h, w, _ = x.shape
    co = p["w_up"].shape[-1]
    up = jnp.einsum("nhwc,cyxo->nhywxo", x, p["w_up"]).reshape(n, 2 * h, 2 * w, co)
    up = up + p["b_up"]
    y = jnp.concatenate([up, sk], axis=-1)
    y = _conv_bn_relu_ref(y, p["w1"], p["b1"], p["g1"], p["be1"], p["m1"], p["v1"])
    y = _conv_bn_relu_ref(y, p["w2"], p["b2"], p["g2"], p["be2"], p["m2"], p["v2"])
    return jnp.transpose(y, (0, 3, 1, 2))


# ----------------------------------------------------------------------------
# Synthetic, deterministic parameters.
# ----------------------------------------------------------------------------
def make_decoder_params(key, in_channels, out_channels):
    cskip = in_channels - out_channels       # concat must have in_channels total
    ks = jax.random.split(key, 14)
    f32 = jnp.float32
    return {
        "w_up": 0.1 * jax.random.normal(ks[0], (in_channels, 2, 2, out_channels), f32),
        "b_up": 0.1 * jax.random.normal(ks[1], (out_channels,), f32),
        "w1": 0.1 * jax.random.normal(ks[2], (3, 3, out_channels + cskip, out_channels), f32),
        "b1": 0.1 * jax.random.normal(ks[3], (out_channels,), f32),
        "g1": 1.0 + 0.1 * jax.random.normal(ks[4], (out_channels,), f32),
        "be1": 0.1 * jax.random.normal(ks[5], (out_channels,), f32),
        "m1": 0.1 * jax.random.normal(ks[6], (out_channels,), f32),
        "v1": 1.0 + jnp.abs(jax.random.normal(ks[7], (out_channels,), f32)),
        "w2": 0.1 * jax.random.normal(ks[8], (3, 3, out_channels, out_channels), f32),
        "b2": 0.1 * jax.random.normal(ks[9], (out_channels,), f32),
        "g2": 1.0 + 0.1 * jax.random.normal(ks[10], (out_channels,), f32),
        "be2": 0.1 * jax.random.normal(ks[11], (out_channels,), f32),
        "m2": 0.1 * jax.random.normal(ks[12], (out_channels,), f32),
        "v2": 1.0 + jnp.abs(jax.random.normal(ks[13], (out_channels,), f32)),
    }


if __name__ == "__main__":
    key = jax.random.PRNGKey(0)
    kx, ksk, kp = jax.random.split(key, 3)

    batch, in_channels, out_channels = 2, 8, 4
    h_lo = w_lo = 16                          # upconv doubles this to 32
    h_hi = w_hi = 2 * h_lo
    skip_channels = in_channels - out_channels

    x = jax.random.normal(kx, (batch, in_channels, h_lo, w_lo), jnp.float32)
    skip = jax.random.normal(ksk, (batch, skip_channels, h_hi, w_hi), jnp.float32)
    params = make_decoder_params(kp, in_channels, out_channels)
    kparams = prepare_kernel_params(params, w_lo)

    fwd = jax.jit(decoder_block_pallas)
    out = jax.block_until_ready(fwd(x, skip, kparams))
    assert out.shape == (batch, out_channels, h_hi, w_hi)

    ref = jax.block_until_ready(decoder_block_ref(x, skip, params))
    max_err = float(jnp.max(jnp.abs(out - ref)))
    assert max_err < 5e-2, f"Pallas output mismatch vs reference: {max_err}"

    print("KERNEL_OK")
</pallas_src>

<mosaic_0001>
module attributes {stable_mosaic.version = 11 : i64} {
  func.func @_decoder_kernel(%arg0: i32, %arg1: memref<2x16x128xbf16, #tpu.memory_space<vmem>>, %arg2: memref<2x16x256xbf16, #tpu.memory_space<vmem>>, %arg3: memref<128x256xbf16, #tpu.memory_space<vmem>>, %arg4: memref<1x256xf32, #tpu.memory_space<vmem>>, %arg5: memref<1024x256xbf16, #tpu.memory_space<vmem>>, %arg6: memref<1x256xf32, #tpu.memory_space<vmem>>, %arg7: memref<512x256xbf16, #tpu.memory_space<vmem>>, %arg8: memref<1x256xf32, #tpu.memory_space<vmem>>, %arg9: memref<2x16x256xf32, #tpu.memory_space<vmem>>) attributes {dimension_semantics = [#tpu.dimension_semantics<parallel>], iteration_bounds = array<i64: 1>, scalar_prefetch = 0 : i64, scratch_operands = 0 : i64, tpu.core_type = #tpu.core_type<tc>, window_params = [{transform_indices = @transform_0, window_bounds = array<i64: 2, 16, 128>}, {transform_indices = @transform_1, window_bounds = array<i64: 2, 16, 256>}, {pipeline_mode = #tpu.pipeline_mode<synchronous>, transform_indices = @transform_2, window_bounds = array<i64: 128, 256>}, {pipeline_mode = #tpu.pipeline_mode<synchronous>, transform_indices = @transform_3, window_bounds = array<i64: 1, 256>}, {pipeline_mode = #tpu.pipeline_mode<synchronous>, transform_indices = @transform_4, window_bounds = array<i64: 1024, 256>}, {pipeline_mode = #tpu.pipeline_mode<synchronous>, transform_indices = @transform_5, window_bounds = array<i64: 1, 256>}, {pipeline_mode = #tpu.pipeline_mode<synchronous>, transform_indices = @transform_6, window_bounds = array<i64: 512, 256>}, {pipeline_mode = #tpu.pipeline_mode<synchronous>, transform_indices = @transform_7, window_bounds = array<i64: 1, 256>}, {transform_indices = @transform_8, window_bounds = array<i64: 2, 16, 256>}]} {
    %0 = tpu.iota {dimensions = array<i32: 0>} : vector<32x1xi32>
    %c16_i32 = arith.constant 16 : i32
    %c0_i32 = arith.constant 0 : i32
    %1 = arith.cmpi eq, %c16_i32, %c0_i32 : i32
    %c1_i32 = arith.constant 1 : i32
    %2 = arith.select %1, %c1_i32, %c16_i32 : i32
    %3 = vector.broadcast %2 : i32 to vector<32x1xi32>
    %4 = arith.remsi %0, %3 : vector<32x1xi32>
    %c0_i32_0 = arith.constant 0 : i32
    %5 = vector.broadcast %c0_i32_0 : i32 to vector<32x1xi32>
    %6 = arith.cmpi ne, %4, %5 : vector<32x1xi32>
    %c0_i32_1 = arith.constant 0 : i32
    %7 = vector.broadcast %c0_i32_1 : i32 to vector<32x1xi32>
    %8 = arith.cmpi slt, %4, %7 : vector<32x1xi32>
    %c0_i32_2 = arith.constant 0 : i32
    %9 = arith.cmpi slt, %2, %c0_i32_2 : i32
    %10 = vector.broadcast %9 : i1 to vector<32x1xi1>
    %11 = vector.broadcast %10 : vector<32x1xi1> to vector<32x1xi1>
    %12 = arith.xori %8, %11 : vector<32x1xi1>
    %13 = arith.andi %12, %6 : vector<32x1xi1>
    %14 = vector.broadcast %2 : i32 to vector<32x1xi32>
    %15 = arith.addi %4, %14 : vector<32x1xi32>
    %16 = arith.select %13, %15, %4 : vector<32x1xi1>, vector<32x1xi32>
    %c0_i32_3 = arith.constant 0 : i32
    %17 = vector.broadcast %c0_i32_3 : i32 to vector<32x1xi32>
    %18 = arith.cmpi eq, %16, %17 : vector<32x1xi32>
    %c15_i32 = arith.constant 15 : i32
    %19 = vector.broadcast %c15_i32 : i32 to vector<32x1xi32>
    %20 = arith.cmpi eq, %16, %19 : vector<32x1xi32>
    %c0 = arith.constant 0 : index
    %c0_4 = arith.constant 0 : index
    %c0_5 = arith.constant 0 : index
    %21 = vector.load %arg1[%c0, %c0_4, %c0_5] : memref<2x16x128xbf16, #tpu.memory_space<vmem>>, vector<2x16x128xbf16>
    %22 = vector.shape_cast %21 : vector<2x16x128xbf16> to vector<32x128xbf16>
    %c0_6 = arith.constant 0 : index
    %c0_7 = arith.constant 0 : index
    %23 = vector.load %arg3[%c0_6, %c0_7] : memref<128x256xbf16, #tpu.memory_space<vmem>>, vector<128x256xbf16>
    %cst = arith.constant dense<0.000000e+00> : vector<32x256xf32>
    %24 = tpu.matmul %22, %23, %cst {dimension_numbers = #tpu.dot_dimension_numbers<[1], [0], [0], [1], [0, 0, 1, 1], [], []>} : vector<32x128xbf16>, vector<128x256xbf16>, vector<32x256xf32> -> vector<32x256xf32>
    %c0_8 = arith.constant 0 : index
    %c0_9 = arith.constant 0 : index
    %25 = vector.load %arg4[%c0_8, %c0_9] : memref<1x256xf32, #tpu.memory_space<vmem>>, vector<1x256xf32>
    %26 = vector.broadcast %25 : vector<1x256xf32> to vector<32x256xf32>
    %27 = arith.addf %24, %26 : vector<32x256xf32>
    %28 = arith.truncf %27 : vector<32x256xf32> to vector<32x256xbf16>
    %29 = vector.extract_strided_slice %28 {offsets = [0, 0], sizes = [32, 128], strides = [1, 1]} : vector<32x256xbf16> to vector<32x128xbf16>
    %30 = vector.extract_strided_slice %28 {offsets = [0, 128], sizes = [32, 128], strides = [1, 1]} : vector<32x256xbf16> to vector<32x128xbf16>
    %c0_10 = arith.constant 0 : index
    %c0_11 = arith.constant 0 : index
    %c0_12 = arith.constant 0 : index
    %31 = vector.load %arg2[%c0_10, %c0_11, %c0_12] : memref<2x16x256xbf16, #tpu.memory_space<vmem>>, vector<2x16x256xbf16>
    %32 = vector.shape_cast %31 : vector<2x16x256xbf16> to vector<32x256xbf16>
    %33 = vector.extract_strided_slice %32 {offsets = [0, 0], sizes = [32, 128], strides = [1, 1]} : vector<32x256xbf16> to vector<32x128xbf16>
    %34 = vector.extract_strided_slice %32 {offsets = [0, 128], sizes = [32, 128], strides = [1, 1]} : vector<32x256xbf16> to vector<32x128xbf16>
    %35 = vector.extract_strided_slice %30 {offsets = [0, 0], sizes = [1, 128], strides = [1, 1]} : vector<32x128xbf16> to vector<1x128xbf16>
    %36 = vector.extract_strided_slice %30 {offsets = [0, 0], sizes = [31, 128], strides = [1, 1]} : vector<32x128xbf16> to vector<31x128xbf16>
    %37 = tpu.concatenate %35, %36 in 0 : vector<1x128xbf16>, vector<31x128xbf16> -> vector<32x128xbf16>
    %cst_13 = arith.constant 0.000000e+00 : bf16
    %38 = vector.broadcast %cst_13 : bf16 to vector<32x128xbf16>
    %39 = vector.shape_cast %18 : vector<32x1xi1> to vector<32x1xi1>
    %40 = vector.broadcast %39 : vector<32x1xi1> to vector<32x128xi1>
    %41 = arith.select %40, %38, %37 : vector<32x128xi1>, vector<32x128xbf16>
    %42 = vector.extract_strided_slice %29 {offsets = [1, 0], sizes = [31, 128], strides = [1, 1]} : vector<32x128xbf16> to vector<31x128xbf16>
    %43 = vector.extract_strided_slice %29 {offsets = [31, 0], sizes = [1, 128], strides = [1, 1]} : vector<32x128xbf16> to vector<1x128xbf16>
    %44 = tpu.concatenate %42, %43 in 0 : vector<31x128xbf16>, vector<1x128xbf16> -> vector<32x128xbf16>
    %cst_14 = arith.constant 0.000000e+00 : bf16
    %45 = vector.broadcast %cst_14 : bf16 to vector<32x128xbf16>
    %46 = vector.shape_cast %20 : vector<32x1xi1> to vector<32x1xi1>
    %47 = vector.broadcast %46 : vector<32x1xi1> to vector<32x128xi1>
    %48 = arith.select %47, %45, %44 : vector<32x128xi1>, vector<32x128xbf16>
    %49 = vector.extract_strided_slice %34 {offsets = [0, 0], sizes = [1, 128], strides = [1, 1]} : vector<32x128xbf16> to vector<1x128xbf16>
    %50 = vector.extract_strided_slice %34 {offsets = [0, 0], sizes = [31, 128], strides = [1, 1]} : vector<32x128xbf16> to vector<31x128xbf16>
    %51 = tpu.concatenate %49, %50 in 0 : vector<1x128xbf16>, vector<31x128xbf16> -> vector<32x128xbf16>
    %cst_15 = arith.constant 0.000000e+00 : bf16
    %52 = vector.broadcast %cst_15 : bf16 to vector<32x128xbf16>
    %53 = vector.shape_cast %18 : vector<32x1xi1> to vector<32x1xi1>
    %54 = vector.broadcast %53 : vector<32x1xi1> to vector<32x128xi1>
    %55 = arith.select %54, %52, %51 : vector<32x128xi1>, vector<32x128xbf16>
    %56 = vector.extract_strided_slice %33 {offsets = [1, 0], sizes = [31, 128], strides = [1, 1]} : vector<32x128xbf16> to vector<31x128xbf16>
    %57 = vector.extract_strided_slice %33 {offsets = [31, 0], sizes = [1, 128], strides = [1, 1]} : vector<32x128xbf16> to vector<1x128xbf16>
    %58 = tpu.concatenate %56, %57 in 0 : vector<31x128xbf16>, vector<1x128xbf16> -> vector<32x128xbf16>
    %cst_16 = arith.constant 0.000000e+00 : bf16
    %59 = vector.broadcast %cst_16 : bf16 to vector<32x128xbf16>
    %60 = vector.shape_cast %20 : vector<32x1xi1> to vector<32x1xi1>
    %61 = vector.broadcast %60 : vector<32x1xi1> to vector<32x128xi1>
    %62 = arith.select %61, %59, %58 : vector<32x128xi1>, vector<32x128xbf16>
    %63 = tpu.concatenate %28, %41, %48, %32, %55, %62 in 1 : vector<32x256xbf16>, vector<32x128xbf16>, vector<32x128xbf16>, vector<32x256xbf16>, vector<32x128xbf16>, vector<32x128xbf16> -> vector<32x1024xbf16>
    %c0_17 = arith.constant 0 : index
    %c0_18 = arith.constant 0 : index
    %64 = vector.load %arg5[%c0_17, %c0_18] : memref<1024x256xbf16, #tpu.memory_space<vmem>>, vector<1024x256xbf16>
    %cst_19 = arith.constant dense<0.000000e+00> : vector<32x256xf32>
    %65 = tpu.matmul %63, %64, %cst_19 {dimension_numbers = #tpu.dot_dimension_numbers<[1], [0], [0], [1], [0, 0, 1, 1], [], []>} : vector<32x1024xbf16>, vector<1024x256xbf16>, vector<32x256xf32> -> vector<32x256xf32>
    %c0_20 = arith.constant 0 : index
    %c0_21 = arith.constant 0 : index
    %66 = vector.load %arg6[%c0_20, %c0_21] : memref<1x256xf32, #tpu.memory_space<vmem>>, vector<1x256xf32>
    %67 = vector.broadcast %66 : vector<1x256xf32> to vector<32x256xf32>
    %68 = arith.addf %65, %67 : vector<32x256xf32>
    %cst_22 = arith.constant 0.000000e+00 : f32
    %69 = vector.broadcast %cst_22 : f32 to vector<32x256xf32>
    %70 = arith.maximumf %68, %69 : vector<32x256xf32>
    %71 = arith.truncf %70 : vector<32x256xf32> to vector<32x256xbf16>
    %72 = vector.extract_strided_slice %71 {offsets = [0, 0], sizes = [32, 128], strides = [1, 1]} : vector<32x256xbf16> to vector<32x128xbf16>
    %73 = vector.extract_strided_slice %71 {offsets = [0, 128], sizes = [32, 128], strides = [1, 1]} : vector<32x256xbf16> to vector<32x128xbf16>
    %74 = vector.extract_strided_slice %73 {offsets = [0, 0], sizes = [1, 128], strides = [1, 1]} : vector<32x128xbf16> to vector<1x128xbf16>
    %75 = vector.extract_strided_slice %73 {offsets = [0, 0], sizes = [31, 128], strides = [1, 1]} : vector<32x128xbf16> to vector<31x128xbf16>
    %76 = tpu.concatenate %74, %75 in 0 : vector<1x128xbf16>, vector<31x128xbf16> -> vector<32x128xbf16>
    %cst_23 = arith.constant 0.000000e+00 : bf16
    %77 = vector.broadcast %cst_23 : bf16 to vector<32x128xbf16>
    %78 = vector.shape_cast %18 : vector<32x1xi1> to vector<32x1xi1>
    %79 = vector.broadcast %78 : vector<32x1xi1> to vector<32x128xi1>
    %80 = arith.select %79, %77, %76 : vector<32x128xi1>, vector<32x128xbf16>
    %81 = vector.extract_strided_slice %72 {offsets = [1, 0], sizes = [31, 128], strides = [1, 1]} : vector<32x128xbf16> to vector<31x128xbf16>
    %82 = vector.extract_strided_slice %72 {offsets = [31, 0], sizes = [1, 128], strides = [1, 1]} : vector<32x128xbf16> to vector<1x128xbf16>
    %83 = tpu.concatenate %81, %82 in 0 : vector<31x128xbf16>, vector<1x128xbf16> -> vector<32x128xbf16>
    %cst_24 = arith.constant 0.000000e+00 : bf16
    %84 = vector.broadcast %cst_24 : bf16 to vector<32x128xbf16>
    %85 = vector.shape_cast %20 : vector<32x1xi1> to vector<32x1xi1>
    %86 = vector.broadcast %85 : vector<32x1xi1> to vector<32x128xi1>
    %87 = arith.select %86, %84, %83 : vector<32x128xi1>, vector<32x128xbf16>
    %88 = tpu.concatenate %71, %80, %87 in 1 : vector<32x256xbf16>, vector<32x128xbf16>, vector<32x128xbf16> -> vector<32x512xbf16>
    %c0_25 = arith.constant 0 : index
    %c0_26 = arith.constant 0 : index
    %89 = vector.load %arg7[%c0_25, %c0_26] : memref<512x256xbf16, #tpu.memory_space<vmem>>, vector<512x256xbf16>
    %cst_27 = arith.constant dense<0.000000e+00> : vector<32x256xf32>
    %90 = tpu.matmul %88, %89, %cst_27 {dimension_numbers = #tpu.dot_dimension_numbers<[1], [0], [0], [1], [0, 0, 1, 1], [], []>} : vector<32x512xbf16>, vector<512x256xbf16>, vector<32x256xf32> -> vector<32x256xf32>
    %c0_28 = arith.constant 0 : index
    %c0_29 = arith.constant 0 : index
    %91 = vector.load %arg8[%c0_28, %c0_29] : memref<1x256xf32, #tpu.memory_space<vmem>>, vector<1x256xf32>
    %92 = vector.broadcast %91 : vector<1x256xf32> to vector<32x256xf32>
    %93 = arith.addf %90, %92 : vector<32x256xf32>
    %cst_30 = arith.constant 0.000000e+00 : f32
    %94 = vector.broadcast %cst_30 : f32 to vector<32x256xf32>
    %95 = arith.maximumf %93, %94 : vector<32x256xf32>
    %96 = vector.shape_cast %95 : vector<32x256xf32> to vector<2x16x256xf32>
    %c0_31 = arith.constant 0 : index
    %c0_32 = arith.constant 0 : index
    %c0_33 = arith.constant 0 : index
    %97 = vector.load %arg9[%c0_31, %c0_32, %c0_33] : memref<2x16x256xf32, #tpu.memory_space<vmem>>, vector<2x16x256xf32>
    tpu.vector_store %arg9[%c0_31, %c0_32, %c0_33], %96 {strides = array<i32>} : memref<2x16x256xf32, #tpu.memory_space<vmem>>, vector<2x16x256xf32>,
    return
  }
  func.func @transform_0(%arg0: i32) -> (i32, i32, i32) {
    %c0_i32 = arith.constant 0 : i32
    %c0_i32_0 = arith.constant 0 : i32
    %c0_i32_1 = arith.constant 0 : i32
    return %arg0, %c0_i32, %c0_i32_0 : i32, i32, i32
  }
  func.func @transform_1(%arg0: i32) -> (i32, i32, i32) {
    %c0_i32 = arith.constant 0 : i32
    %c0_i32_0 = arith.constant 0 : i32
    %c0_i32_1 = arith.constant 0 : i32
    return %arg0, %c0_i32, %c0_i32_0 : i32, i32, i32
  }
  func.func @transform_2(%arg0: i32) -> (i32, i32) {
    %c0_i32 = arith.constant 0 : i32
    %c0_i32_0 = arith.constant 0 : i32
    %c0_i32_1 = arith.constant 0 : i32
    return %c0_i32, %c0_i32_0 : i32, i32
  }
  func.func @transform_3(%arg0: i32) -> (i32, i32) {
    %c0_i32 = arith.constant 0 : i32
    %c0_i32_0 = arith.constant 0 : i32
    %c0_i32_1 = arith.constant 0 : i32
    return %c0_i32, %c0_i32_0 : i32, i32
  }
  func.func @transform_4(%arg0: i32) -> (i32, i32) {
    %c0_i32 = arith.constant 0 : i32
    %c0_i32_0 = arith.constant 0 : i32
    %c0_i32_1 = arith.constant 0 : i32
    return %c0_i32, %c0_i32_0 : i32, i32
  }
  func.func @transform_5(%arg0: i32) -> (i32, i32) {
    %c0_i32 = arith.constant 0 : i32
    %c0_i32_0 = arith.constant 0 : i32
    %c0_i32_1 = arith.constant 0 : i32
    return %c0_i32, %c0_i32_0 : i32, i32
  }
  func.func @transform_6(%arg0: i32) -> (i32, i32) {
    %c0_i32 = arith.constant 0 : i32
    %c0_i32_0 = arith.constant 0 : i32
    %c0_i32_1 = arith.constant 0 : i32
    return %c0_i32, %c0_i32_0 : i32, i32
  }
  func.func @transform_7(%arg0: i32) -> (i32, i32) {
    %c0_i32 = arith.constant 0 : i32
    %c0_i32_0 = arith.constant 0 : i32
    %c0_i32_1 = arith.constant 0 : i32
    return %c0_i32, %c0_i32_0 : i32, i32
  }
  func.func @transform_8(%arg0: i32) -> (i32, i32, i32) {
    %c0_i32 = arith.constant 0 : i32
    %c0_i32_0 = arith.constant 0 : i32
    %c0_i32_1 = arith.constant 0 : i32
    return %arg0, %c0_i32, %c0_i32_0 : i32, i32, i32
  }
}

</mosaic_0001>

<llo_original>
// kernel: decoder_block_pallas.1
$region0: #{decoder_block_pallas.1}
  #allocation0 [shape = 'u32[]', space=smem, size = 0x4, offset = 0x4, fixed_abs, tag = 'smem constant byte address 0x4 - core index']
  #allocation1 [shape = 'u32[72,128]{1,0:T(1,128)}', space=vmem, size = 0x9000, scoped, tag = 'internal scratch']
  %s0 = inlined_call_operand.vmem [shape: bf16[2,16,128], index: 0, kind: input, shape index: {}]
  %s1 = inlined_call_operand.vmem [shape: bf16[2,16,256], index: 1, kind: input, shape index: {}]
  %s2 = inlined_call_operand.vmem [shape: bf16[128,256], index: 2, kind: input, shape index: {}]
  %s3 = inlined_call_operand.vmem [shape: f32[1,256], index: 3, kind: input, shape index: {}]
  %s4 = inlined_call_operand.vmem [shape: bf16[1024,256], index: 4, kind: input, shape index: {}]
  %s5 = inlined_call_operand.vmem [shape: f32[1,256], index: 5, kind: input, shape index: {}]
  %s6 = inlined_call_operand.vmem [shape: bf16[512,256], index: 6, kind: input, shape index: {}]
  %s7 = inlined_call_operand.vmem [shape: f32[1,256], index: 7, kind: input, shape index: {}]
  %s8 = inlined_call_operand.vmem [shape: f32[2,16,256], index: 8, kind: output, shape index: {}]
  %s9 = sld [smem:[#allocation0]]
  $region42: #{decoder_block_pallas.1} parent=0
    _
  %s11 = ssub.s32 1, %s9
  %s12 = scalar_select 0, %s11, %s9
  // Predicated region
  $region2: #{decoder_block_pallas.1} parent=0 // pred_check
    _
  $region3: #{decoder_block_pallas.1} parent=0 // pred_check_branch
    %14 = sbr.rel (0) target = $region5
  $region4: #{decoder_block_pallas.1} parent=0 // pred_region
    _
  $region5: #{decoder_block_pallas.1} parent=0 // pred_fallthru
    _
  // Predicated region
  $region6: #{decoder_block_pallas.1} parent=0 // pred_check
    _
  $region7: #{decoder_block_pallas.1} parent=0 // pred_check_branch
    %16 = sbr.rel (0) target = $region9
  $region8: #{decoder_block_pallas.1} parent=0 // pred_region
    _
  $region9: #{decoder_block_pallas.1} parent=0 // pred_fallthru
    _
  // Predicated region
  $region10: #{decoder_block_pallas.1} parent=0 // pred_check
    _
  $region11: #{decoder_block_pallas.1} parent=0 // pred_check_branch
    %18 = sbr.rel (0) target = $region13
  $region12: #{decoder_block_pallas.1} parent=0 // pred_region
    _
  $region13: #{decoder_block_pallas.1} parent=0 // pred_fallthru
    _
  // Predicated region
  $region14: #{decoder_block_pallas.1} parent=0 // pred_check
    _
  $region15: #{decoder_block_pallas.1} parent=0 // pred_check_branch
    %20 = sbr.rel (0) target = $region17
  $region16: #{decoder_block_pallas.1} parent=0 // pred_region
    _
  $region17: #{decoder_block_pallas.1} parent=0 // pred_fallthru
    _
  // Predicated region
  $region18: #{decoder_block_pallas.1} parent=0 // pred_check
    _
  $region19: #{decoder_block_pallas.1} parent=0 // pred_check_branch
    %22 = sbr.rel (0) target = $region21
  $region20: #{decoder_block_pallas.1} parent=0 // pred_region
    _
  $region21: #{decoder_block_pallas.1} parent=0 // pred_fallthru
    _
  // Predicated region
  $region22: #{decoder_block_pallas.1} parent=0 // pred_check
    _
  $region23: #{decoder_block_pallas.1} parent=0 // pred_check_branch
    %24 = sbr.rel (0) target = $region25
  $region24: #{decoder_block_pallas.1} parent=0 // pred_region
    _
  $region25: #{decoder_block_pallas.1} parent=0 // pred_fallthru
    _
  // Predicated region
  $region26: #{decoder_block_pallas.1} parent=0 // pred_check
    _
  $region27: #{decoder_block_pallas.1} parent=0 // pred_check_branch
    %26 = sbr.rel (0) target = $region29
  $region28: #{decoder_block_pallas.1} parent=0 // pred_region
    _
  $region29: #{decoder_block_pallas.1} parent=0 // pred_fallthru
    _
  // Predicated region
  $region30: #{decoder_block_pallas.1} parent=0 // pred_check
    _
  $region31: #{decoder_block_pallas.1} parent=0 // pred_check_branch
    %28 = sbr.rel (0) target = $region33
  $region32: #{decoder_block_pallas.1} parent=0 // pred_region
    _
  $region33: #{decoder_block_pallas.1} parent=0 // pred_fallthru
    _
  %v32 = vlaneseq
  %v33 = vshrl.u32 %v32, 7
  %v34 = vadd.s32 %v33, 8
  %v35 = vadd.s32 %v33, 16
  %v36 = vadd.s32 %v33, 24
  %vm37 = vcmp.lt.s32.totalorder %v33, 0
  %v38 = vsub.s32 0, %v33
  %v39 = vsel %vm37, %v38, %v33
  %v40 = vshrl.u32 %v39, 4
  %v41 = vand.u32 %v39, 15
  %v42 = vsub.s32 0, %v41
  %v43 = vsel %vm37, %v42, %v41
  %vm44 = vcmp.lt.s32.totalorder %v34, 0
  %v45 = vsub.s32 0, %v34
  %v46 = vsel %vm44, %v45, %v34
  %v47 = vshrl.u32 %v46, 4
  %v48 = vand.u32 %v46, 15
  %v49 = vsub.s32 0, %v48
  %v50 = vsel %vm44, %v49, %v48
  %vm51 = vcmp.lt.s32.totalorder %v35, 0
  %v52 = vsub.s32 0, %v35
  %v53 = vsel %vm51, %v52, %v35
  %v54 = vshrl.u32 %v53, 4
  %v55 = vand.u32 %v53, 15
  %v56 = vsub.s32 0, %v55
  %v57 = vsel %vm51, %v56, %v55
  %vm58 = vcmp.lt.s32.totalorder %v36, 0
  %v59 = vsub.s32 0, %v36
  %v60 = vsel %vm58, %v59, %v36
  %v61 = vshrl.u32 %v60, 4
  %v62 = vand.u32 %v60, 15
  %v63 = vsub.s32 0, %v62
  %v64 = vsel %vm58, %v63, %v62
  %vm65 = vcmp.ne.s32.totalorder %v43, 0
  %vm66 = vcmp.ne.s32.totalorder %v50, 0
  %vm67 = vcmp.ne.s32.totalorder %v57, 0
  %vm68 = vcmp.ne.s32.totalorder %v64, 0
  %vm69 = vcmp.lt.s32.totalorder %v43, 0
  %vm70 = vcmp.lt.s32.totalorder %v50, 0
  %vm71 = vcmp.lt.s32.totalorder %v57, 0
  %vm72 = vcmp.lt.s32.totalorder %v64, 0
  %vm73 = vmand %vm69, %vm65
  %vm74 = vmand %vm70, %vm66
  %vm75 = vmand %vm71, %vm67
  %vm76 = vmand %vm72, %vm68
  %v77 = vadd.s32 %v43, 16
  %v78 = vadd.s32 %v50, 16
  %v79 = vadd.s32 %v57, 16
  %v80 = vadd.s32 %v64, 16
  %v81 = vsel %vm73, %v77, %v43
  %v82 = vsel %vm74, %v78, %v50
  %v83 = vsel %vm75, %v79, %v57
  %v84 = vsel %vm76, %v80, %v64
  %vm85 = vcmp.eq.s32.totalorder %v81, 0
  %vm86 = vcmp.eq.s32.totalorder %v82, 0
  %vm87 = vcmp.eq.s32.totalorder %v83, 0
  %vm88 = vcmp.eq.s32.totalorder %v84, 0
  %vm89 = vcmp.eq.s32.totalorder %v81, 15
  %vm90 = vcmp.eq.s32.totalorder %v82, 15
  %vm91 = vcmp.eq.s32.totalorder %v83, 15
  %vm92 = vcmp.eq.s32.totalorder %v84, 15
  %v93 = vld [vmem:[%s0] sm:$0xf]
  %v94 = vld [vmem:[%s0 + $0x4] sm:$0xf]
  %v95 = vld [vmem:[%s0 + $0x8] sm:$0xf]
  %v96 = vld [vmem:[%s0 + $0xc] sm:$0xf]
  %v97 = vld [vmem:[%s2] sm:$0xff]
  %v98 = vld [vmem:[%s2 + $0x8] sm:$0xff]
  %v99 = vld [vmem:[%s2 + $0x10] sm:$0xff]
  %v100 = vld [vmem:[%s2 + $0x18] sm:$0xff]
  %v101 = vld [vmem:[%s2 + $0x20] sm:$0xff]
  %v102 = vld [vmem:[%s2 + $0x28] sm:$0xff]
  %v103 = vld [vmem:[%s2 + $0x30] sm:$0xff]
  %v104 = vld [vmem:[%s2 + $0x38] sm:$0xff]
  %v105 = vld [vmem:[%s2 + $0x40] sm:$0xff]
  %v106 = vld [vmem:[%s2 + $0x48] sm:$0xff]
  %v107 = vld [vmem:[%s2 + $0x50] sm:$0xff]
  %v108 = vld [vmem:[%s2 + $0x58] sm:$0xff]
  %v109 = vld [vmem:[%s2 + $0x60] sm:$0xff]
  %v110 = vld [vmem:[%s2 + $0x68] sm:$0xff]
  %v111 = vld [vmem:[%s2 + $0x70] sm:$0xff]
  %v112 = vld [vmem:[%s2 + $0x78] sm:$0xff]
  %v113 = vld [vmem:[%s3] sm:$0x3]
  %v115 = vperm.slane %v113, 0
  %v116 = vperm.slane %v113, 1
  %v123 = vunpack.c.l.b16 %v93
  %v124 = vunpack.c.l.b16 %v94
  %v125 = vunpack.c.l.b16 %v95
  %v126 = vunpack.c.l.b16 %v96
  %v127 = vpack.c.b16 %v124, %v123
  %v128 = vpack.c.b16 %v126, %v125
  %v147 = vunpack.c.l.b16 %v97
  %v148 = vunpack.c.h.b16 %v97
  %v149 = vunpack.c.l.b16 %v98
  %v150 = vunpack.c.h.b16 %v98
  %v151 = vunpack.c.l.b16 %v99
  %v152 = vunpack.c.h.b16 %v99
  %v153 = vunpack.c.l.b16 %v100
  %v154 = vunpack.c.h.b16 %v100
  %v155 = vunpack.c.l.b16 %v101
  %v156 = vunpack.c.h.b16 %v101
  %v157 = vunpack.c.l.b16 %v102
  %v158 = vunpack.c.h.b16 %v102
  %v159 = vunpack.c.l.b16 %v103
  %v160 = vunpack.c.h.b16 %v103
  %v161 = vunpack.c.l.b16 %v104
  %v162 = vunpack.c.h.b16 %v104
  %v163 = vunpack.c.l.b16 %v105
  %v164 = vunpack.c.h.b16 %v105
  %v165 = vunpack.c.l.b16 %v106
  %v166 = vunpack.c.h.b16 %v106
  %v167 = vunpack.c.l.b16 %v107
  %v168 = vunpack.c.h.b16 %v107
  %v169 = vunpack.c.l.b16 %v108
  %v170 = vunpack.c.h.b16 %v108
  %v171 = vunpack.c.l.b16 %v109
  %v172 = vunpack.c.h.b16 %v109
  %v173 = vunpack.c.l.b16 %v110
  %v174 = vunpack.c.h.b16 %v110
  %v175 = vunpack.c.l.b16 %v111
  %v176 = vunpack.c.h.b16 %v111
  %v177 = vunpack.c.l.b16 %v112
  %v178 = vunpack.c.h.b16 %v112
  %v179 = vpack.c.b16 %v149, %v147
  %v180 = vpack.c.b16 %v150, %v148
  %v181 = vpack.c.b16 %v153, %v151
  %v182 = vpack.c.b16 %v154, %v152
  %v183 = vpack.c.b16 %v157, %v155
  %v184 = vpack.c.b16 %v158, %v156
  %v185 = vpack.c.b16 %v161, %v159
  %v186 = vpack.c.b16 %v162, %v160
  %v187 = vpack.c.b16 %v165, %v163
  %v188 = vpack.c.b16 %v166, %v164
  %v189 = vpack.c.b16 %v169, %v167
  %v190 = vpack.c.b16 %v170, %v168
  %v191 = vpack.c.b16 %v173, %v171
  %v192 = vpack.c.b16 %v174, %v172
  %v193 = vpack.c.b16 %v177, %v175
  %v194 = vpack.c.b16 %v178, %v176
  %211 = vmatpush.bf16.msra.mxu0 %v193
  %212 = vmatpush.bf16.msra.mxu0 %v191
  %213 = vmatpush.bf16.msra.mxu0 %v189
  %214 = vmatpush.bf16.msra.mxu0 %v187
  %215 = vmatpush.bf16.msra.mxu0 %v185
  %216 = vmatpush.bf16.msra.mxu0 %v183
  %217 = vmatpush.bf16.msra.mxu0 %v181
  %218 = vmatpush.bf16.msra.mxu0 %v179
  %219 = vmatmul.bf16.gmra.mxu0 %v127
  %v220 = vpop.f32.mrf.mxu0
  %v221 = vadd.f32 %v115, %v220
  %v222 = vpop.f32.mrf.mxu0
  %v223 = vadd.f32 %v115, %v222
  %224 = vmatmul.bf16.gmra.mxu0 %v128
  %v225 = vpop.f32.mrf.mxu0
  %v226 = vadd.f32 %v115, %v225
  %v227 = vpop.f32.mrf.mxu0
  %v228 = vadd.f32 %v115, %v227
  %229 = vdwg.mxu0
  %230 = vmatpush.bf16.msra.mxu0 %v194
  %231 = vmatpush.bf16.msra.mxu0 %v192
  %232 = vmatpush.bf16.msra.mxu0 %v190
  %233 = vmatpush.bf16.msra.mxu0 %v188
  %234 = vmatpush.bf16.msra.mxu0 %v186
  %235 = vmatpush.bf16.msra.mxu0 %v184
  %236 = vmatpush.bf16.msra.mxu0 %v182
  %237 = vmatpush.bf16.msra.mxu0 %v180
  %238 = vmatmul.bf16.gmra.mxu0 %v127
  %v239 = vpop.f32.mrf.mxu0
  %v240 = vadd.f32 %v116, %v239
  %v241 = vpop.f32.mrf.mxu0
  %v242 = vadd.f32 %v116, %v241
  %243 = vmatmul.bf16.gmra.mxu0 %v128
  %v244 = vpop.f32.mrf.mxu0
  %v245 = vadd.f32 %v116, %v244
  %v246 = vpop.f32.mrf.mxu0
  %v247 = vadd.f32 %v116, %v246
  %248 = vdwg.mxu0
  %v249 = vpack.c.bf16 %v240, %v221
  %v250 = vpack.c.bf16 %v242, %v223
  %v251 = vpack.c.bf16 %v245, %v226
  %v252 = vpack.c.bf16 %v247, %v228
  %v253 = vld [vmem:[%s1] sm:$0xff]
  %v254 = vld [vmem:[%s1 + $0x8] sm:$0xff]
  %v255 = vld [vmem:[%s1 + $0x10] sm:$0xff]
  %v256 = vld [vmem:[%s1 + $0x18] sm:$0xff]
  %v258 = vunpack.c.h.b16 %v249
  %v259 = vpack.c.b16 %v258, %v258
  %v264 = vunpack.c.h.b16 %v250
  %v265 = vunpack.c.h.b16 %v251
  %v266 = vunpack.c.h.b16 %v252
  %v267 = vpack.c.b16 %v264, %v258
  %v268 = vpack.c.b16 %v266, %v265
  %vm269 = vsmask.f32 256
  %v271 = vshrl.u32 %v267, 16
  %v273 = vrot.slane %v271, 7
  %v274 = vshll.u32 %v267, 16
  %v276 = vor.u32 %v273, %v274
  %v278 = vshrl.u32 %v268, 16
  %v280 = vrot.slane %v278, 7
  %v281 = vshll.u32 %v268, 16
  %v283 = vor.u32 %v280, %v281
  %v284 = vsel %vm269, %v273, %v283
  %vm287 = vcmask 1040384
  %vm288 = vmand %vm287, %vm269
  %v289 = vsel %vm288, %v259, %v276
  %v290 = vsel %vm85, 1, 0
  %v291 = vsel %vm86, 1, 0
  %v292 = vsel %vm87, 1, 0
  %v293 = vsel %vm88, 1, 0
  %vm294 = vcmp.eq.s32.totalorder %v290, 1
  %vm295 = vcmp.eq.s32.totalorder %v291, 1
  %vm296 = vcmp.eq.s32.totalorder %v292, 1
  %vm297 = vcmp.eq.s32.totalorder %v293, 1
  %vm298 = vmpackc.low %vm294, %vm294
  %vm299 = vmpackc.low %vm295, %vm295
  %vm300 = vmpackc.low %vm296, %vm296
  %vm301 = vmpackc.low %vm297, %vm297
  %v302 = vsel %vm298, 65537, 0
  %v303 = vsel %vm299, 65537, 0
  %v304 = vsel %vm300, 65537, 0
  %v305 = vsel %vm301, 65537, 0
  %v306 = vunpack.c.l.b16 %v302
  %v307 = vunpack.c.l.b16 %v303
  %v308 = vunpack.c.l.b16 %v304
  %v309 = vunpack.c.l.b16 %v305
  %v310 = vpack.c.b16 %v307, %v306
  %v311 = vpack.c.b16 %v309, %v308
  %v312 = vunpack.c.l.b16 %v310
  %v313 = vunpack.c.h.b16 %v310
  %v314 = vunpack.c.l.b16 0
  %v315 = vunpack.c.h.b16 0
  %vm316 = vcmp.ne.s32.totalorder %v312, %v314
  %vm317 = vcmp.ne.s32.totalorder %v313, %v315
  %vm318 = vmpackc.low %vm317, %vm316
  %v319 = vunpack.c.l.b16 %v311
  %v320 = vunpack.c.h.b16 %v311
  %v321 = vunpack.c.l.b16 0
  %v322 = vunpack.c.h.b16 0
  %vm323 = vcmp.ne.s32.totalorder %v319, %v321
  %vm324 = vcmp.ne.s32.totalorder %v320, %v322
  %vm325 = vmpackc.low %vm324, %vm323
  %v326 = vsel %vm318, 0, %v289
  %v327 = vsel %vm325, 0, %v284
  %v328 = vunpack.c.l.b16 %v249
  %v329 = vunpack.c.l.b16 %v250
  %v330 = vunpack.c.l.b16 %v251
  %v331 = vunpack.c.l.b16 %v252
  %v332 = vpack.c.b16 %v329, %v328
  %v333 = vpack.c.b16 %v331, %v330
  %vm334 = vsmask.f32 7424
  %v336 = vshrl.u32 %v332, 16
  %v338 = vshll.u32 %v332, 16
  %v340 = vrot.slane %v338, 1
  %v341 = vor.u32 %v336, %v340
  %v343 = vshll.u32 %v333, 16
  %v345 = vrot.slane %v343, 1
  %v346 = vsel %vm334, %v341, %v345
  %v347 = vshrl.u32 %v333, 16
  %v349 = vor.u32 %v347, %v345
  %v352 = vpack.c.b16 %v331, %v331
  %vm354 = vcmask 1047552
  %vm355 = vmand %vm354, %vm334
  %v356 = vsel %vm355, %v349, %v352
  %v357 = vsel %vm89, 1, 0
  %v358 = vsel %vm90, 1, 0
  %v359 = vsel %vm91, 1, 0
  %v360 = vsel %vm92, 1, 0
  %vm361 = vcmp.eq.s32.totalorder %v357, 1
  %vm362 = vcmp.eq.s32.totalorder %v358, 1
  %vm363 = vcmp.eq.s32.totalorder %v359, 1
  %vm364 = vcmp.eq.s32.totalorder %v360, 1
  %vm365 = vmpackc.low %vm361, %vm361
  %vm366 = vmpackc.low %vm362, %vm362
  %vm367 = vmpackc.low %vm363, %vm363
  %vm368 = vmpackc.low %vm364, %vm364
  %v369 = vsel %vm365, 65537, 0
  %v370 = vsel %vm366, 65537, 0
  %v371 = vsel %vm367, 65537, 0
  %v372 = vsel %vm368, 65537, 0
  %v373 = vunpack.c.l.b16 %v369
  %v374 = vunpack.c.l.b16 %v370
  %v375 = vunpack.c.l.b16 %v371
  %v376 = vunpack.c.l.b16 %v372
  %v377 = vpack.c.b16 %v374, %v373
  %v378 = vpack.c.b16 %v376, %v375
  %v379 = vunpack.c.l.b16 %v377
  %v380 = vunpack.c.h.b16 %v377
  %v381 = vunpack.c.l.b16 0
  %v382 = vunpack.c.h.b16 0
  %vm383 = vcmp.ne.s32.totalorder %v379, %v381
  %vm384 = vcmp.ne.s32.totalorder %v380, %v382
  %vm385 = vmpackc.low %vm384, %vm383
  %v386 = vunpack.c.l.b16 %v378
  %v387 = vunpack.c.h.b16 %v378
  %v388 = vunpack.c.l.b16 0
  %v389 = vunpack.c.h.b16 0
  %vm390 = vcmp.ne.s32.totalorder %v386, %v388
  %vm391 = vcmp.ne.s32.totalorder %v387, %v389
  %vm392 = vmpackc.low %vm391, %vm390
  %v393 = vsel %vm385, 0, %v346
  %v394 = vsel %vm392, 0, %v356
  %v396 = vunpack.c.h.b16 %v253
  %v397 = vpack.c.b16 %v396, %v396
  %v402 = vunpack.c.h.b16 %v254
  %v403 = vunpack.c.h.b16 %v255
  %v404 = vunpack.c.h.b16 %v256
  %v405 = vpack.c.b16 %v402, %v396
  %v406 = vpack.c.b16 %v404, %v403
  %v408 = vshrl.u32 %v405, 16
  %v410 = vrot.slane %v408, 7
  %v411 = vshll.u32 %v405, 16
  %v413 = vor.u32 %v410, %v411
  %v415 = vshrl.u32 %v406, 16
  %v417 = vrot.slane %v415, 7
  %v418 = vshll.u32 %v406, 16
  %v420 = vor.u32 %v417, %v418
  %v421 = vsel %vm269, %v410, %v420
  %v424 = vsel %vm288, %v397, %v413
  %v425 = vsel %vm318, 0, %v424
  %v426 = vsel %vm325, 0, %v421
  %v427 = vunpack.c.l.b16 %v253
  %v428 = vunpack.c.l.b16 %v254
  %v429 = vunpack.c.l.b16 %v255
  %v430 = vunpack.c.l.b16 %v256
  %v431 = vpack.c.b16 %v428, %v427
  %v432 = vpack.c.b16 %v430, %v429
  %v434 = vshrl.u32 %v431, 16
  %v436 = vshll.u32 %v431, 16
  %v438 = vrot.slane %v436, 1
  %v439 = vor.u32 %v434, %v438
  %v441 = vshll.u32 %v432, 16
  %v443 = vrot.slane %v441, 1
  %v444 = vsel %vm334, %v439, %v443
  %v445 = vshrl.u32 %v432, 16
  %v447 = vor.u32 %v445, %v443
  %v450 = vpack.c.b16 %v430, %v430
  %v452 = vsel %vm355, %v447, %v450
  %v453 = vsel %vm385, 0, %v444
  %v454 = vsel %vm392, 0, %v452
  %v463 = vld [vmem:[%s4] sm:$0xff]
  %v464 = vld [vmem:[%s4 + $0x8] sm:$0xff]
  %v465 = vld [vmem:[%s4 + $0x10] sm:$0xff]
  %v466 = vld [vmem:[%s4 + $0x18] sm:$0xff]
  %v467 = vld [vmem:[%s4 + $0x20] sm:$0xff]
  %v468 = vld [vmem:[%s4 + $0x28] sm:$0xff]
  %v469 = vld [vmem:[%s4 + $0x30] sm:$0xff]
  %v470 = vld [vmem:[%s4 + $0x38] sm:$0xff]
  %v471 = vld [vmem:[%s4 + $0x40] sm:$0xff]
  %v472 = vld [vmem:[%s4 + $0x48] sm:$0xff]
  %v473 = vld [vmem:[%s4 + $0x50] sm:$0xff]
  %v474 = vld [vmem:[%s4 + $0x58] sm:$0xff]
  %v475 = vld [vmem:[%s4 + $0x60] sm:$0xff]
  %v476 = vld [vmem:[%s4 + $0x68] sm:$0xff]
  %v477 = vld [vmem:[%s4 + $0x70] sm:$0xff]
  %v478 = vld [vmem:[%s4 + $0x78] sm:$0xff]
  %v479 = vld [vmem:[%s4 + $0x80] sm:$0xff]
  %v480 = vld [vmem:[%s4 + $0x88] sm:$0xff]
  %v481 = vld [vmem:[%s4 + $0x90] sm:$0xff]
  %v482 = vld [vmem:[%s4 + $0x98] sm:$0xff]
  %v483 = vld [vmem:[%s4 + $0xa0] sm:$0xff]
  %v484 = vld [vmem:[%s4 + $0xa8] sm:$0xff]
  %v485 = vld [vmem:[%s4 + $0xb0] sm:$0xff]
  %v486 = vld [vmem:[%s4 + $0xb8] sm:$0xff]
  %v487 = vld [vmem:[%s4 + $0xc0] sm:$0xff]
  %v488 = vld [vmem:[%s4 + $0xc8] sm:$0xff]
  %v489 = vld [vmem:[%s4 + $0xd0] sm:$0xff]
  %v490 = vld [vmem:[%s4 + $0xd8] sm:$0xff]
  %v491 = vld [vmem:[%s4 + $0xe0] sm:$0xff]
  %v492 = vld [vmem:[%s4 + $0xe8] sm:$0xff]
  %v493 = vld [vmem:[%s4 + $0xf0] sm:$0xff]
  %v494 = vld [vmem:[%s4 + $0xf8] sm:$0xff]
  %v495 = vld [vmem:[%s4 + $0x100] sm:$0xff]
  %v496 = vld [vmem:[%s4 + $0x108] sm:$0xff]
  %v497 = vld [vmem:[%s4 + $0x110] sm:$0xff]
  %v498 = vld [vmem:[%s4 + $0x118] sm:$0xff]
  %v499 = vld [vmem:[%s4 + $0x120] sm:$0xff]
  %v500 = vld [vmem:[%s4 + $0x128] sm:$0xff]
  %v501 = vld [vmem:[%s4 + $0x130] sm:$0xff]
  %v502 = vld [vmem:[%s4 + $0x138] sm:$0xff]
  %v503 = vld [vmem:[%s4 + $0x140] sm:$0xff]
  %v504 = vld [vmem:[%s4 + $0x148] sm:$0xff]
  %v505 = vld [vmem:[%s4 + $0x150] sm:$0xff]
  %v506 = vld [vmem:[%s4 + $0x158] sm:$0xff]
  %v507 = vld [vmem:[%s4 + $0x160] sm:$0xff]
  %v508 = vld [vmem:[%s4 + $0x168] sm:$0xff]
  %v509 = vld [vmem:[%s4 + $0x170] sm:$0xff]
  %v510 = vld [vmem:[%s4 + $0x178] sm:$0xff]
  %v511 = vld [vmem:[%s4 + $0x180] sm:$0xff]
  %v512 = vld [vmem:[%s4 + $0x188] sm:$0xff]
  %v513 = vld [vmem:[%s4 + $0x190] sm:$0xff]
  %v514 = vld [vmem:[%s4 + $0x198] sm:$0xff]
  %v515 = vld [vmem:[%s4 + $0x1a0] sm:$0xff]
  %v516 = vld [vmem:[%s4 + $0x1a8] sm:$0xff]
  %v517 = vld [vmem:[%s4 + $0x1b0] sm:$0xff]
  %v518 = vld [vmem:[%s4 + $0x1b8] sm:$0xff]
  %v519 = vld [vmem:[%s4 + $0x1c0] sm:$0xff]
  %v520 = vld [vmem:[%s4 + $0x1c8] sm:$0xff]
  %v521 = vld [vmem:[%s4 + $0x1d0] sm:$0xff]
  %v522 = vld [vmem:[%s4 + $0x1d8] sm:$0xff]
  %v523 = vld [vmem:[%s4 + $0x1e0] sm:$0xff]
  %v524 = vld [vmem:[%s4 + $0x1e8] sm:$0xff]
  %v525 = vld [vmem:[%s4 + $0x1f0] sm:$0xff]
  %v526 = vld [vmem:[%s4 + $0x1f8] sm:$0xff]
  %v527 = vld [vmem:[%s4 + $0x200] sm:$0xff]
  %v528 = vld [vmem:[%s4 + $0x208] sm:$0xff]
  %v529 = vld [vmem:[%s4 + $0x210] sm:$0xff]
  %v530 = vld [vmem:[%s4 + $0x218] sm:$0xff]
  %v531 = vld [vmem:[%s4 + $0x220] sm:$0xff]
  %v532 = vld [vmem:[%s4 + $0x228] sm:$0xff]
  %v533 = vld [vmem:[%s4 + $0x230] sm:$0xff]
  %v534 = vld [vmem:[%s4 + $0x238] sm:$0xff]
  %v535 = vld [vmem:[%s4 + $0x240] sm:$0xff]
  %v536 = vld [vmem:[%s4 + $0x248] sm:$0xff]
  %v537 = vld [vmem:[%s4 + $0x250] sm:$0xff]
  %v538 = vld [vmem:[%s4 + $0x258] sm:$0xff]
  %v539 = vld [vmem:[%s4 + $0x260] sm:$0xff]
  %v540 = vld [vmem:[%s4 + $0x268] sm:$0xff]
  %v541 = vld [vmem:[%s4 + $0x270] sm:$0xff]
  %v542 = vld [vmem:[%s4 + $0x278] sm:$0xff]
  %v543 = vld [vmem:[%s4 + $0x280] sm:$0xff]
  %v544 = vld [vmem:[%s4 + $0x288] sm:$0xff]
  %v545 = vld [vmem:[%s4 + $0x290] sm:$0xff]
  %v546 = vld [vmem:[%s4 + $0x298] sm:$0xff]
  %v547 = vld [vmem:[%s4 + $0x2a0] sm:$0xff]
  %v548 = vld [vmem:[%s4 + $0x2a8] sm:$0xff]
  %v549 = vld [vmem:[%s4 + $0x2b0] sm:$0xff]
  %v550 = vld [vmem:[%s4 + $0x2b8] sm:$0xff]
  %v551 = vld [vmem:[%s4 + $0x2c0] sm:$0xff]
  %v552 = vld [vmem:[%s4 + $0x2c8] sm:$0xff]
  %v553 = vld [vmem:[%s4 + $0x2d0] sm:$0xff]
  %v554 = vld [vmem:[%s4 + $0x2d8] sm:$0xff]
  %v555 = vld [vmem:[%s4 + $0x2e0] sm:$0xff]
  %v556 = vld [vmem:[%s4 + $0x2e8] sm:$0xff]
  %v557 = vld [vmem:[%s4 + $0x2f0] sm:$0xff]
  %v558 = vld [vmem:[%s4 + $0x2f8] sm:$0xff]
  %v559 = vld [vmem:[%s4 + $0x300] sm:$0xff]
  %v560 = vld [vmem:[%s4 + $0x308] sm:$0xff]
  %v561 = vld [vmem:[%s4 + $0x310] sm:$0xff]
  %v562 = vld [vmem:[%s4 + $0x318] sm:$0xff]
  %v563 = vld [vmem:[%s4 + $0x320] sm:$0xff]
  %v564 = vld [vmem:[%s4 + $0x328] sm:$0xff]
  %v565 = vld [vmem:[%s4 + $0x330] sm:$0xff]
  %v566 = vld [vmem:[%s4 + $0x338] sm:$0xff]
  %v567 = vld [vmem:[%s4 + $0x340] sm:$0xff]
  %v568 = vld [vmem:[%s4 + $0x348] sm:$0xff]
  %v569 = vld [vmem:[%s4 + $0x350] sm:$0xff]
  %v570 = vld [vmem:[%s4 + $0x358] sm:$0xff]
  %v571 = vld [vmem:[%s4 + $0x360] sm:$0xff]
  %v572 = vld [vmem:[%s4 + $0x368] sm:$0xff]
  %v573 = vld [vmem:[%s4 + $0x370] sm:$0xff]
  %v574 = vld [vmem:[%s4 + $0x378] sm:$0xff]
  %v575 = vld [vmem:[%s4 + $0x380] sm:$0xff]
  %v576 = vld [vmem:[%s4 + $0x388] sm:$0xff]
  %v577 = vld [vmem:[%s4 + $0x390] sm:$0xff]
  %v578 = vld [vmem:[%s4 + $0x398] sm:$0xff]
  %v579 = vld [vmem:[%s4 + $0x3a0] sm:$0xff]
  %v580 = vld [vmem:[%s4 + $0x3a8] sm:$0xff]
  %v581 = vld [vmem:[%s4 + $0x3b0] sm:$0xff]
  %v582 = vld [vmem:[%s4 + $0x3b8] sm:$0xff]
  %v583 = vld [vmem:[%s4 + $0x3c0] sm:$0xff]
  %v584 = vld [vmem:[%s4 + $0x3c8] sm:$0xff]
  %v585 = vld [vmem:[%s4 + $0x3d0] sm:$0xff]
  %v586 = vld [vmem:[%s4 + $0x3d8] sm:$0xff]
  %v587 = vld [vmem:[%s4 + $0x3e0] sm:$0xff]
  %v588 = vld [vmem:[%s4 + $0x3e8] sm:$0xff]
  %v589 = vld [vmem:[%s4 + $0x3f0] sm:$0xff]
  %v590 = vld [vmem:[%s4 + $0x3f8] sm:$0xff]
  %v591 = vld [vmem:[%s5] sm:$0x3]
  %v593 = vperm.slane %v591, 0
  %v594 = vperm.slane %v591, 1
  %v725 = vunpack.c.l.b16 %v463
  %v726 = vunpack.c.h.b16 %v463
  %v727 = vunpack.c.l.b16 %v464
  %v728 = vunpack.c.h.b16 %v464
  %v729 = vunpack.c.l.b16 %v465
  %v730 = vunpack.c.h.b16 %v465
  %v731 = vunpack.c.l.b16 %v466
  %v732 = vunpack.c.h.b16 %v466
  %v733 = vunpack.c.l.b16 %v467
  %v734 = vunpack.c.h.b16 %v467
  %v735 = vunpack.c.l.b16 %v468
  %v736 = vunpack.c.h.b16 %v468
  %v737 = vunpack.c.l.b16 %v469
  %v738 = vunpack.c.h.b16 %v469
  %v739 = vunpack.c.l.b16 %v470
  %v740 = vunpack.c.h.b16 %v470
  %v741 = vunpack.c.l.b16 %v471
  %v742 = vunpack.c.h.b16 %v471
  %v743 = vunpack.c.l.b16 %v472
  %v744 = vunpack.c.h.b16 %v472
  %v745 = vunpack.c.l.b16 %v473
  %v746 = vunpack.c.h.b16 %v473
  %v747 = vunpack.c.l.b16 %v474
  %v748 = vunpack.c.h.b16 %v474
  %v749 = vunpack.c.l.b16 %v475
  %v750 = vunpack.c.h.b16 %v475
  %v751 = vunpack.c.l.b16 %v476
  %v752 = vunpack.c.h.b16 %v476
  %v753 = vunpack.c.l.b16 %v477
  %v754 = vunpack.c.h.b16 %v477
  %v755 = vunpack.c.l.b16 %v478
  %v756 = vunpack.c.h.b16 %v478
  %v757 = vunpack.c.l.b16 %v479
  %v758 = vunpack.c.h.b16 %v479
  %v759 = vunpack.c.l.b16 %v480
  %v760 = vunpack.c.h.b16 %v480
  %v761 = vunpack.c.l.b16 %v481
  %v762 = vunpack.c.h.b16 %v481
  %v763 = vunpack.c.l.b16 %v482
  %v764 = vunpack.c.h.b16 %v482
  %v765 = vunpack.c.l.b16 %v483
  %v766 = vunpack.c.h.b16 %v483
  %v767 = vunpack.c.l.b16 %v484
  %v768 = vunpack.c.h.b16 %v484
  %v769 = vunpack.c.l.b16 %v485
  %v770 = vunpack.c.h.b16 %v485
  %v771 = vunpack.c.l.b16 %v486
  %v772 = vunpack.c.h.b16 %v486
  %v773 = vunpack.c.l.b16 %v487
  %v774 = vunpack.c.h.b16 %v487
  %v775 = vunpack.c.l.b16 %v488
  %v776 = vunpack.c.h.b16 %v488
  %v777 = vunpack.c.l.b16 %v489
  %v778 = vunpack.c.h.b16 %v489
  %v779 = vunpack.c.l.b16 %v490
  %v780 = vunpack.c.h.b16 %v490
  %v781 = vunpack.c.l.b16 %v491
  %v782 = vunpack.c.h.b16 %v491
  %v783 = vunpack.c.l.b16 %v492
  %v784 = vunpack.c.h.b16 %v492
  %v785 = vunpack.c.l.b16 %v493
  %v786 = vunpack.c.h.b16 %v493
  %v787 = vunpack.c.l.b16 %v494
  %v788 = vunpack.c.h.b16 %v494
  %v789 = vunpack.c.l.b16 %v495
  %v790 = vunpack.c.h.b16 %v495
  %v791 = vunpack.c.l.b16 %v496
  %v792 = vunpack.c.h.b16 %v496
  %v793 = vunpack.c.l.b16 %v497
  %v794 = vunpack.c.h.b16 %v497
  %v795 = vunpack.c.l.b16 %v498
  %v796 = vunpack.c.h.b16 %v498
  %v797 = vunpack.c.l.b16 %v499
  %v798 = vunpack.c.h.b16 %v499
  %v799 = vunpack.c.l.b16 %v500
  %v800 = vunpack.c.h.b16 %v500
  %v801 = vunpack.c.l.b16 %v501
  %v802 = vunpack.c.h.b16 %v501
  %v803 = vunpack.c.l.b16 %v502
  %v804 = vunpack.c.h.b16 %v502
  %v805 = vunpack.c.l.b16 %v503
  %v806 = vunpack.c.h.b16 %v503
  %v807 = vunpack.c.l.b16 %v504
  %v808 = vunpack.c.h.b16 %v504
  %v809 = vunpack.c.l.b16 %v505
  %v810 = vunpack.c.h.b16 %v505
  %v811 = vunpack.c.l.b16 %v506
  %v812 = vunpack.c.h.b16 %v506
  %v813 = vunpack.c.l.b16 %v507
  %v814 = vunpack.c.h.b16 %v507
  %v815 = vunpack.c.l.b16 %v508
  %v816 = vunpack.c.h.b16 %v508
  %v817 = vunpack.c.l.b16 %v509
  %v818 = vunpack.c.h.b16 %v509
  %v819 = vunpack.c.l.b16 %v510
  %v820 = vunpack.c.h.b16 %v510
  %v821 = vunpack.c.l.b16 %v511
  %v822 = vunpack.c.h.b16 %v511
  %v823 = vunpack.c.l.b16 %v512
  %v824 = vunpack.c.h.b16 %v512
  %v825 = vunpack.c.l.b16 %v513
  %v826 = vunpack.c.h.b16 %v513
  %v827 = vunpack.c.l.b16 %v514
  %v828 = vunpack.c.h.b16 %v514
  %v829 = vunpack.c.l.b16 %v515
  %v830 = vunpack.c.h.b16 %v515
  %v831 = vunpack.c.l.b16 %v516
  %v832 = vunpack.c.h.b16 %v516
  %v833 = vunpack.c.l.b16 %v517
  %v834 = vunpack.c.h.b16 %v517
  %v835 = vunpack.c.l.b16 %v518
  %v836 = vunpack.c.h.b16 %v518
  %v837 = vunpack.c.l.b16 %v519
  %v838 = vunpack.c.h.b16 %v519
  %v839 = vunpack.c.l.b16 %v520
  %v840 = vunpack.c.h.b16 %v520
  %v841 = vunpack.c.l.b16 %v521
  %v842 = vunpack.c.h.b16 %v521
  %v843 = vunpack.c.l.b16 %v522
  %v844 = vunpack.c.h.b16 %v522
  %v845 = vunpack.c.l.b16 %v523
  %v846 = vunpack.c.h.b16 %v523
  %v847 = vunpack.c.l.b16 %v524
  %v848 = vunpack.c.h.b16 %v524
  %v849 = vunpack.c.l.b16 %v525
  %v850 = vunpack.c.h.b16 %v525
  %v851 = vunpack.c.l.b16 %v526
  %v852 = vunpack.c.h.b16 %v526
  %v853 = vunpack.c.l.b16 %v527
  %v854 = vunpack.c.h.b16 %v527
  %v855 = vunpack.c.l.b16 %v528
  %v856 = vunpack.c.h.b16 %v528
  %v857 = vunpack.c.l.b16 %v529
  %v858 = vunpack.c.h.b16 %v529
  %v859 = vunpack.c.l.b16 %v530
  %v860 = vunpack.c.h.b16 %v530
  %v861 = vunpack.c.l.b16 %v531
  %v862 = vunpack.c.h.b16 %v531
  %v863 = vunpack.c.l.b16 %v532
  %v864 = vunpack.c.h.b16 %v532
  %v865 = vunpack.c.l.b16 %v533
  %v866 = vunpack.c.h.b16 %v533
  %v867 = vunpack.c.l.b16 %v534
  %v868 = vunpack.c.h.b16 %v534
  %v869 = vunpack.c.l.b16 %v535
  %v870 = vunpack.c.h.b16 %v535
  %v871 = vunpack.c.l.b16 %v536
  %v872 = vunpack.c.h.b16 %v536
  %v873 = vunpack.c.l.b16 %v537
  %v874 = vunpack.c.h.b16 %v537
  %v875 = vunpack.c.l.b16 %v538
  %v876 = vunpack.c.h.b16 %v538
  %v877 = vunpack.c.l.b16 %v539
  %v878 = vunpack.c.h.b16 %v539
  %v879 = vunpack.c.l.b16 %v540
  %v880 = vunpack.c.h.b16 %v540
  %v881 = vunpack.c.l.b16 %v541
  %v882 = vunpack.c.h.b16 %v541
  %v883 = vunpack.c.l.b16 %v542
  %v884 = vunpack.c.h.b16 %v542
  %v885 = vunpack.c.l.b16 %v543
  %v886 = vunpack.c.h.b16 %v543
  %v887 = vunpack.c.l.b16 %v544
  %v888 = vunpack.c.h.b16 %v544
  %v889 = vunpack.c.l.b16 %v545
  %v890 = vunpack.c.h.b16 %v545
  %v891 = vunpack.c.l.b16 %v546
  %v892 = vunpack.c.h.b16 %v546
  %v893 = vunpack.c.l.b16 %v547
  %v894 = vunpack.c.h.b16 %v547
  %v895 = vunpack.c.l.b16 %v548
  %v896 = vunpack.c.h.b16 %v548
  %v897 = vunpack.c.l.b16 %v549
  %v898 = vunpack.c.h.b16 %v549
  %v899 = vunpack.c.l.b16 %v550
  %v900 = vunpack.c.h.b16 %v550
  %v901 = vunpack.c.l.b16 %v551
  %v902 = vunpack.c.h.b16 %v551
  %v903 = vunpack.c.l.b16 %v552
  %v904 = vunpack.c.h.b16 %v552
  %v905 = vunpack.c.l.b16 %v553
  %v906 = vunpack.c.h.b16 %v553
  %v907 = vunpack.c.l.b16 %v554
  %v908 = vunpack.c.h.b16 %v554
  %v909 = vunpack.c.l.b16 %v555
  %v910 = vunpack.c.h.b16 %v555
  %v911 = vunpack.c.l.b16 %v556
  %v912 = vunpack.c.h.b16 %v556
  %v913 = vunpack.c.l.b16 %v557
  %v914 = vunpack.c.h.b16 %v557
  %v915 = vunpack.c.l.b16 %v558
  %v916 = vunpack.c.h.b16 %v558
  %v917 = vunpack.c.l.b16 %v559
  %v918 = vunpack.c.h.b16 %v559
  %v919 = vunpack.c.l.b16 %v560
  %v920 = vunpack.c.h.b16 %v560
  %v921 = vunpack.c.l.b16 %v561
  %v922 = vunpack.c.h.b16 %v561
  %v923 = vunpack.c.l.b16 %v562
  %v924 = vunpack.c.h.b16 %v562
  %v925 = vunpack.c.l.b16 %v563
  %v926 = vunpack.c.h.b16 %v563
  %v927 = vunpack.c.l.b16 %v564
  %v928 = vunpack.c.h.b16 %v564
  %v929 = vunpack.c.l.b16 %v565
  %v930 = vunpack.c.h.b16 %v565
  %v931 = vunpack.c.l.b16 %v566
  %v932 = vunpack.c.h.b16 %v566
  %v933 = vunpack.c.l.b16 %v567
  %v934 = vunpack.c.h.b16 %v567
  %v935 = vunpack.c.l.b16 %v568
  %v936 = vunpack.c.h.b16 %v568
  %v937 = vunpack.c.l.b16 %v569
  %v938 = vunpack.c.h.b16 %v569
  %v939 = vunpack.c.l.b16 %v570
  %v940 = vunpack.c.h.b16 %v570
  %v941 = vunpack.c.l.b16 %v571
  %v942 = vunpack.c.h.b16 %v571
  %v943 = vunpack.c.l.b16 %v572
  %v944 = vunpack.c.h.b16 %v572
  %v945 = vunpack.c.l.b16 %v573
  %v946 = vunpack.c.h.b16 %v573
  %v947 = vunpack.c.l.b16 %v574
  %v948 = vunpack.c.h.b16 %v574
  %v949 = vunpack.c.l.b16 %v575
  %v950 = vunpack.c.h.b16 %v575
  %v951 = vunpack.c.l.b16 %v576
  %v952 = vunpack.c.h.b16 %v576
  %v953 = vunpack.c.l.b16 %v577
  %v954 = vunpack.c.h.b16 %v577
  %v955 = vunpack.c.l.b16 %v578
  %v956 = vunpack.c.h.b16 %v578
  %v957 = vunpack.c.l.b16 %v579
  %v958 = vunpack.c.h.b16 %v579
  %v959 = vunpack.c.l.b16 %v580
  %v960 = vunpack.c.h.b16 %v580
  %v961 = vunpack.c.l.b16 %v581
  %v962 = vunpack.c.h.b16 %v581
  %v963 = vunpack.c.l.b16 %v582
  %v964 = vunpack.c.h.b16 %v582
  %v965 = vunpack.c.l.b16 %v583
  %v966 = vunpack.c.h.b16 %v583
  %v967 = vunpack.c.l.b16 %v584
  %v968 = vunpack.c.h.b16 %v584
  %v969 = vunpack.c.l.b16 %v585
  %v970 = vunpack.c.h.b16 %v585
  %v971 = vunpack.c.l.b16 %v586
  %v972 = vunpack.c.h.b16 %v586
  %v973 = vunpack.c.l.b16 %v587
  %v974 = vunpack.c.h.b16 %v587
  %v975 = vunpack.c.l.b16 %v588
  %v976 = vunpack.c.h.b16 %v588
  %v977 = vunpack.c.l.b16 %v589
  %v978 = vunpack.c.h.b16 %v589
  %v979 = vunpack.c.l.b16 %v590
  %v980 = vunpack.c.h.b16 %v590
  %v981 = vpack.c.b16 %v727, %v725
  %v982 = vpack.c.b16 %v728, %v726
  %v983 = vpack.c.b16 %v731, %v729
  %v984 = vpack.c.b16 %v732, %v730
  %v985 = vpack.c.b16 %v735, %v733
  %v986 = vpack.c.b16 %v736, %v734
  %v987 = vpack.c.b16 %v739, %v737
  %v988 = vpack.c.b16 %v740, %v738
  %v989 = vpack.c.b16 %v743, %v741
  %v990 = vpack.c.b16 %v744, %v742
  %v991 = vpack.c.b16 %v747, %v745
  %v992 = vpack.c.b16 %v748, %v746
  %v993 = vpack.c.b16 %v751, %v749
  %v994 = vpack.c.b16 %v752, %v750
  %v995 = vpack.c.b16 %v755, %v753
  %v996 = vpack.c.b16 %v756, %v754
  %v997 = vpack.c.b16 %v759, %v757
  %v998 = vpack.c.b16 %v760, %v758
  %v999 = vpack.c.b16 %v763, %v761
  %v1000 = vpack.c.b16 %v764, %v762
  %v1001 = vpack.c.b16 %v767, %v765
  %v1002 = vpack.c.b16 %v768, %v766
  %v1003 = vpack.c.b16 %v771, %v769
  %v1004 = vpack.c.b16 %v772, %v770
  %v1005 = vpack.c.b16 %v775, %v773
  %v1006 = vpack.c.b16 %v776, %v774
  %v1007 = vpack.c.b16 %v779, %v777
  %v1008 = vpack.c.b16 %v780, %v778
  %v1009 = vpack.c.b16 %v783, %v781
  %v1010 = vpack.c.b16 %v784, %v782
  %v1011 = vpack.c.b16 %v787, %v785
  %v1012 = vpack.c.b16 %v788, %v786
  %v1013 = vpack.c.b16 %v791, %v789
  %v1014 = vpack.c.b16 %v792, %v790
  %v1015 = vpack.c.b16 %v795, %v793
  %v1016 = vpack.c.b16 %v796, %v794
  %v1017 = vpack.c.b16 %v799, %v797
  %v1018 = vpack.c.b16 %v800, %v798
  %v1019 = vpack.c.b16 %v803, %v801
  %v1020 = vpack.c.b16 %v804, %v802
  %v1021 = vpack.c.b16 %v807, %v805
  %v1022 = vpack.c.b16 %v808, %v806
  %v1023 = vpack.c.b16 %v811, %v809
  %v1024 = vpack.c.b16 %v812, %v810
  %v1025 = vpack.c.b16 %v815, %v813
  %v1026 = vpack.c.b16 %v816, %v814
  %v1027 = vpack.c.b16 %v819, %v817
  %v1028 = vpack.c.b16 %v820, %v818
  %v1029 = vpack.c.b16 %v823, %v821
  %v1030 = vpack.c.b16 %v824, %v822
  %v1031 = vpack.c.b16 %v827, %v825
  %v1032 = vpack.c.b16 %v828, %v826
  %v1033 = vpack.c.b16 %v831, %v829
  %v1034 = vpack.c.b16 %v832, %v830
  %v1035 = vpack.c.b16 %v835, %v833
  %v1036 = vpack.c.b16 %v836, %v834
  %v1037 = vpack.c.b16 %v839, %v837
  %v1038 = vpack.c.b16 %v840, %v838
  %v1039 = vpack.c.b16 %v843, %v841
  %v1040 = vpack.c.b16 %v844, %v842
  %v1041 = vpack.c.b16 %v847, %v845
  %v1042 = vpack.c.b16 %v848, %v846
  %v1043 = vpack.c.b16 %v851, %v849
  %v1044 = vpack.c.b16 %v852, %v850
  %v1045 = vpack.c.b16 %v855, %v853
  %v1046 = vpack.c.b16 %v856, %v854
  %v1047 = vpack.c.b16 %v859, %v857
  %v1048 = vpack.c.b16 %v860, %v858
  %v1049 = vpack.c.b16 %v863, %v861
  %v1050 = vpack.c.b16 %v864, %v862
  %v1051 = vpack.c.b16 %v867, %v865
  %v1052 = vpack.c.b16 %v868, %v866
  %v1053 = vpack.c.b16 %v871, %v869
  %v1054 = vpack.c.b16 %v872, %v870
  %v1055 = vpack.c.b16 %v875, %v873
  %v1056 = vpack.c.b16 %v876, %v874
  %v1057 = vpack.c.b16 %v879, %v877
  %v1058 = vpack.c.b16 %v880, %v878
  %v1059 = vpack.c.b16 %v883, %v881
  %v1060 = vpack.c.b16 %v884, %v882
  %v1061 = vpack.c.b16 %v887, %v885
  %v1062 = vpack.c.b16 %v888, %v886
  %v1063 = vpack.c.b16 %v891, %v889
  %v1064 = vpack.c.b16 %v892, %v890
  %v1065 = vpack.c.b16 %v895, %v893
  %v1066 = vpack.c.b16 %v896, %v894
  %v1067 = vpack.c.b16 %v899, %v897
  %v1068 = vpack.c.b16 %v900, %v898
  %v1069 = vpack.c.b16 %v903, %v901
  %v1070 = vpack.c.b16 %v904, %v902
  %v1071 = vpack.c.b16 %v907, %v905
  %v1072 = vpack.c.b16 %v908, %v906
  %v1073 = vpack.c.b16 %v911, %v909
  %v1074 = vpack.c.b16 %v912, %v910
  %v1075 = vpack.c.b16 %v915, %v913
  %v1076 = vpack.c.b16 %v916, %v914
  %v1077 = vpack.c.b16 %v919, %v917
  %v1078 = vpack.c.b16 %v920, %v918
  %v1079 = vpack.c.b16 %v923, %v921
  %v1080 = vpack.c.b16 %v924, %v922
  %v1081 = vpack.c.b16 %v927, %v925
  %v1082 = vpack.c.b16 %v928, %v926
  %v1083 = vpack.c.b16 %v931, %v929
  %v1084 = vpack.c.b16 %v932, %v930
  %v1085 = vpack.c.b16 %v935, %v933
  %v1086 = vpack.c.b16 %v936, %v934
  %v1087 = vpack.c.b16 %v939, %v937
  %v1088 = vpack.c.b16 %v940, %v938
  %v1089 = vpack.c.b16 %v943, %v941
  %v1090 = vpack.c.b16 %v944, %v942
  %v1091 = vpack.c.b16 %v947, %v945
  %v1092 = vpack.c.b16 %v948, %v946
  %v1093 = vpack.c.b16 %v951, %v949
  %v1094 = vpack.c.b16 %v952, %v950
  %v1095 = vpack.c.b16 %v955, %v953
  %v1096 = vpack.c.b16 %v956, %v954
  %v1097 = vpack.c.b16 %v959, %v957
  %v1098 = vpack.c.b16 %v960, %v958
  %v1099 = vpack.c.b16 %v963, %v961
  %v1100 = vpack.c.b16 %v964, %v962
  %v1101 = vpack.c.b16 %v967, %v965
  %v1102 = vpack.c.b16 %v968, %v966
  %v1103 = vpack.c.b16 %v971, %v969
  %v1104 = vpack.c.b16 %v972, %v970
  %v1105 = vpack.c.b16 %v975, %v973
  %v1106 = vpack.c.b16 %v976, %v974
  %v1107 = vpack.c.b16 %v979, %v977
  %v1108 = vpack.c.b16 %v980, %v978
  %1237 = vmatpush.bf16.msra.mxu0 %v995
  %1238 = vmatpush.bf16.msra.mxu0 %v993
  %1239 = vmatpush.bf16.msra.mxu0 %v991
  %1240 = vmatpush.bf16.msra.mxu0 %v989
  %1241 = vmatpush.bf16.msra.mxu0 %v987
  %1242 = vmatpush.bf16.msra.mxu0 %v985
  %1243 = vmatpush.bf16.msra.mxu0 %v983
  %1244 = vmatpush.bf16.msra.mxu0 %v981
  %1245 = vmatmul.bf16.gmra.mxu0 %v332
  %v1246 = vpop.f32.mrf.mxu0
  %v1247 = vadd.f32 %v593, %v1246
  %v1248 = vpop.f32.mrf.mxu0
  %v1249 = vadd.f32 %v593, %v1248
  %1250 = vmatmul.bf16.gmra.mxu0 %v333
  %v1251 = vpop.f32.mrf.mxu0
  %v1252 = vadd.f32 %v593, %v1251
  %v1253 = vpop.f32.mrf.mxu0
  %v1254 = vadd.f32 %v593, %v1253
  %1255 = vdwg.mxu0
  %1256 = vmatpush.bf16.msra.mxu0 %v1011
  %1257 = vmatpush.bf16.msra.mxu0 %v1009
  %1258 = vmatpush.bf16.msra.mxu0 %v1007
  %1259 = vmatpush.bf16.msra.mxu0 %v1005
  %1260 = vmatpush.bf16.msra.mxu0 %v1003
  %1261 = vmatpush.bf16.msra.mxu0 %v1001
  %1262 = vmatpush.bf16.msra.mxu0 %v999
  %1263 = vmatpush.bf16.msra.mxu0 %v997
  %1264 = vmatmul.bf16.gmra.mxu0 %v267
  %v1265 = vpop.f32.mrf.mxu0
  %v1266 = vadd.f32 %v1247, %v1265
  %v1267 = vpop.f32.mrf.mxu0
  %v1268 = vadd.f32 %v1249, %v1267
  %1269 = vmatmul.bf16.gmra.mxu0 %v268
  %v1270 = vpop.f32.mrf.mxu0
  %v1271 = vadd.f32 %v1252, %v1270
  %v1272 = vpop.f32.mrf.mxu0
  %v1273 = vadd.f32 %v1254, %v1272
  %1274 = vdwg.mxu0
  %1275 = vmatpush.bf16.msra.mxu0 %v1027
  %1276 = vmatpush.bf16.msra.mxu0 %v1025
  %1277 = vmatpush.bf16.msra.mxu0 %v1023
  %1278 = vmatpush.bf16.msra.mxu0 %v1021
  %1279 = vmatpush.bf16.msra.mxu0 %v1019
  %1280 = vmatpush.bf16.msra.mxu0 %v1017
  %1281 = vmatpush.bf16.msra.mxu0 %v1015
  %1282 = vmatpush.bf16.msra.mxu0 %v1013
  %1283 = vmatmul.bf16.gmra.mxu0 %v326
  %v1284 = vpop.f32.mrf.mxu0
  %v1285 = vadd.f32 %v1266, %v1284
  %v1286 = vpop.f32.mrf.mxu0
  %v1287 = vadd.f32 %v1268, %v1286
  %1288 = vmatmul.bf16.gmra.mxu0 %v327
  %v1289 = vpop.f32.mrf.mxu0
  %v1290 = vadd.f32 %v1271, %v1289
  %v1291 = vpop.f32.mrf.mxu0
  %v1292 = vadd.f32 %v1273, %v1291
  %1293 = vdwg.mxu0
  %1294 = vmatpush.bf16.msra.mxu0 %v1043
  %1295 = vmatpush.bf16.msra.mxu0 %v1041
  %1296 = vmatpush.bf16.msra.mxu0 %v1039
  %1297 = vmatpush.bf16.msra.mxu0 %v1037
  %1298 = vmatpush.bf16.msra.mxu0 %v1035
  %1299 = vmatpush.bf16.msra.mxu0 %v1033
  %1300 = vmatpush.bf16.msra.mxu0 %v1031
  %1301 = vmatpush.bf16.msra.mxu0 %v1029
  %1302 = vmatmul.bf16.gmra.mxu0 %v393
  %v1303 = vpop.f32.mrf.mxu0
  %v1304 = vadd.f32 %v1285, %v1303
  %v1305 = vpop.f32.mrf.mxu0
  %v1306 = vadd.f32 %v1287, %v1305
  %1307 = vmatmul.bf16.gmra.mxu0 %v394
  %v1308 = vpop.f32.mrf.mxu0
  %v1309 = vadd.f32 %v1290, %v1308
  %v1310 = vpop.f32.mrf.mxu0
  %v1311 = vadd.f32 %v1292, %v1310
  %1312 = vdwg.mxu0
  %1313 = vmatpush.bf16.msra.mxu0 %v1059
  %1314 = vmatpush.bf16.msra.mxu0 %v1057
  %1315 = vmatpush.bf16.msra.mxu0 %v1055
  %1316 = vmatpush.bf16.msra.mxu0 %v1053
  %1317 = vmatpush.bf16.msra.mxu0 %v1051
  %1318 = vmatpush.bf16.msra.mxu0 %v1049
  %1319 = vmatpush.bf16.msra.mxu0 %v1047
  %1320 = vmatpush.bf16.msra.mxu0 %v1045
  %1321 = vmatmul.bf16.gmra.mxu0 %v431
  %v1322 = vpop.f32.mrf.mxu0
  %v1323 = vadd.f32 %v1304, %v1322
  %v1324 = vpop.f32.mrf.mxu0
  %v1325 = vadd.f32 %v1306, %v1324
  %1326 = vmatmul.bf16.gmra.mxu0 %v432
  %v1327 = vpop.f32.mrf.mxu0
  %v1328 = vadd.f32 %v1309, %v1327
  %v1329 = vpop.f32.mrf.mxu0
  %v1330 = vadd.f32 %v1311, %v1329
  %1331 = vdwg.mxu0
  %1332 = vmatpush.bf16.msra.mxu0 %v1075
  %1333 = vmatpush.bf16.msra.mxu0 %v1073
  %1334 = vmatpush.bf16.msra.mxu0 %v1071
  %1335 = vmatpush.bf16.msra.mxu0 %v1069
  %1336 = vmatpush.bf16.msra.mxu0 %v1067
  %1337 = vmatpush.bf16.msra.mxu0 %v1065
  %1338 = vmatpush.bf16.msra.mxu0 %v1063
  %1339 = vmatpush.bf16.msra.mxu0 %v1061
  %1340 = vmatmul.bf16.gmra.mxu0 %v405
  %v1341 = vpop.f32.mrf.mxu0
  %v1342 = vadd.f32 %v1323, %v1341
  %v1343 = vpop.f32.mrf.mxu0
  %v1344 = vadd.f32 %v1325, %v1343
  %1345 = vmatmul.bf16.gmra.mxu0 %v406
  %v1346 = vpop.f32.mrf.mxu0
  %v1347 = vadd.f32 %v1328, %v1346
  %v1348 = vpop.f32.mrf.mxu0
  %v1349 = vadd.f32 %v1330, %v1348
  %1350 = vdwg.mxu0
  %1351 = vmatpush.bf16.msra.mxu0 %v1091
  %1352 = vmatpush.bf16.msra.mxu0 %v1089
  %1353 = vmatpush.bf16.msra.mxu0 %v1087
  %1354 = vmatpush.bf16.msra.mxu0 %v1085
  %1355 = vmatpush.bf16.msra.mxu0 %v1083
  %1356 = vmatpush.bf16.msra.mxu0 %v1081
  %1357 = vmatpush.bf16.msra.mxu0 %v1079
  %1358 = vmatpush.bf16.msra.mxu0 %v1077
  %1359 = vmatmul.bf16.gmra.mxu0 %v425
  %v1360 = vpop.f32.mrf.mxu0
  %v1361 = vadd.f32 %v1342, %v1360
  %v1362 = vpop.f32.mrf.mxu0
  %v1363 = vadd.f32 %v1344, %v1362
  %1364 = vmatmul.bf16.gmra.mxu0 %v426
  %v1365 = vpop.f32.mrf.mxu0
  %v1366 = vadd.f32 %v1347, %v1365
  %v1367 = vpop.f32.mrf.mxu0
  %v1368 = vadd.f32 %v1349, %v1367
  %1369 = vdwg.mxu0
  %1370 = vmatpush.bf16.msra.mxu0 %v1107
  %1371 = vmatpush.bf16.msra.mxu0 %v1105
  %1372 = vmatpush.bf16.msra.mxu0 %v1103
  %1373 = vmatpush.bf16.msra.mxu0 %v1101
  %1374 = vmatpush.bf16.msra.mxu0 %v1099
  %1375 = vmatpush.bf16.msra.mxu0 %v1097
  %1376 = vmatpush.bf16.msra.mxu0 %v1095
  %1377 = vmatpush.bf16.msra.mxu0 %v1093
  %1378 = vmatmul.bf16.gmra.mxu0 %v453
  %v1379 = vpop.f32.mrf.mxu0
  %v1380 = vadd.f32 %v1361, %v1379
  %v1381 = vpop.f32.mrf.mxu0
  %v1382 = vadd.f32 %v1363, %v1381
  %1383 = vmatmul.bf16.gmra.mxu0 %v454
  %v1384 = vpop.f32.mrf.mxu0
  %v1385 = vadd.f32 %v1366, %v1384
  %v1386 = vpop.f32.mrf.mxu0
  %v1387 = vadd.f32 %v1368, %v1386
  %1388 = vdwg.mxu0
  %1389 = vmatpush.bf16.msra.mxu0 %v996
  %1390 = vmatpush.bf16.msra.mxu0 %v994
  %1391 = vmatpush.bf16.msra.mxu0 %v992
  %1392 = vmatpush.bf16.msra.mxu0 %v990
  %1393 = vmatpush.bf16.msra.mxu0 %v988
  %1394 = vmatpush.bf16.msra.mxu0 %v986
  %1395 = vmatpush.bf16.msra.mxu0 %v984
  %1396 = vmatpush.bf16.msra.mxu0 %v982
  %1397 = vmatmul.bf16.gmra.mxu0 %v332
  %v1398 = vpop.f32.mrf.mxu0
  %v1399 = vadd.f32 %v594, %v1398
  %v1400 = vpop.f32.mrf.mxu0
  %v1401 = vadd.f32 %v594, %v1400
  %1402 = vmatmul.bf16.gmra.mxu0 %v333
  %v1403 = vpop.f32.mrf.mxu0
  %v1404 = vadd.f32 %v594, %v1403
  %v1405 = vpop.f32.mrf.mxu0
  %v1406 = vadd.f32 %v594, %v1405
  %1407 = vdwg.mxu0
  %1408 = vmatpush.bf16.msra.mxu0 %v1012
  %1409 = vmatpush.bf16.msra.mxu0 %v1010
  %1410 = vmatpush.bf16.msra.mxu0 %v1008
  %1411 = vmatpush.bf16.msra.mxu0 %v1006
  %1412 = vmatpush.bf16.msra.mxu0 %v1004
  %1413 = vmatpush.bf16.msra.mxu0 %v1002
  %1414 = vmatpush.bf16.msra.mxu0 %v1000
  %1415 = vmatpush.bf16.msra.mxu0 %v998
  %1416 = vmatmul.bf16.gmra.mxu0 %v267
  %v1417 = vpop.f32.mrf.mxu0
  %v1418 = vadd.f32 %v1399, %v1417
  %v1419 = vpop.f32.mrf.mxu0
  %v1420 = vadd.f32 %v1401, %v1419
  %1421 = vmatmul.bf16.gmra.mxu0 %v268
  %v1422 = vpop.f32.mrf.mxu0
  %v1423 = vadd.f32 %v1404, %v1422
  %v1424 = vpop.f32.mrf.mxu0
  %v1425 = vadd.f32 %v1406, %v1424
  %1426 = vdwg.mxu0
  %1427 = vmatpush.bf16.msra.mxu0 %v1028
  %1428 = vmatpush.bf16.msra.mxu0 %v1026
  %1429 = vmatpush.bf16.msra.mxu0 %v1024
  %1430 = vmatpush.bf16.msra.mxu0 %v1022
  %1431 = vmatpush.bf16.msra.mxu0 %v1020
  %1432 = vmatpush.bf16.msra.mxu0 %v1018
  %1433 = vmatpush.bf16.msra.mxu0 %v1016
  %1434 = vmatpush.bf16.msra.mxu0 %v1014
  %1435 = vmatmul.bf16.gmra.mxu0 %v326
  %v1436 = vpop.f32.mrf.mxu0
  %v1437 = vadd.f32 %v1418, %v1436
  %v1438 = vpop.f32.mrf.mxu0
  %v1439 = vadd.f32 %v1420, %v1438
  %1440 = vmatmul.bf16.gmra.mxu0 %v327
  %v1441 = vpop.f32.mrf.mxu0
  %v1442 = vadd.f32 %v1423, %v1441
  %v1443 = vpop.f32.mrf.mxu0
  %v1444 = vadd.f32 %v1425, %v1443
  %1445 = vdwg.mxu0
  %1446 = vmatpush.bf16.msra.mxu0 %v1044
  %1447 = vmatpush.bf16.msra.mxu0 %v1042
  %1448 = vmatpush.bf16.msra.mxu0 %v1040
  %1449 = vmatpush.bf16.msra.mxu0 %v1038
  %1450 = vmatpush.bf16.msra.mxu0 %v1036
  %1451 = vmatpush.bf16.msra.mxu0 %v1034
  %1452 = vmatpush.bf16.msra.mxu0 %v1032
  %1453 = vmatpush.bf16.msra.mxu0 %v1030
  %1454 = vmatmul.bf16.gmra.mxu0 %v393
  %v1455 = vpop.f32.mrf.mxu0
  %v1456 = vadd.f32 %v1437, %v1455
  %v1457 = vpop.f32.mrf.mxu0
  %v1458 = vadd.f32 %v1439, %v1457
  %1459 = vmatmul.bf16.gmra.mxu0 %v394
  %v1460 = vpop.f32.mrf.mxu0
  %v1461 = vadd.f32 %v1442, %v1460
  %v1462 = vpop.f32.mrf.mxu0
  %v1463 = vadd.f32 %v1444, %v1462
  %1464 = vdwg.mxu0
  %1465 = vmatpush.bf16.msra.mxu0 %v1060
  %1466 = vmatpush.bf16.msra.mxu0 %v1058
  %1467 = vmatpush.bf16.msra.mxu0 %v1056
  %1468 = vmatpush.bf16.msra.mxu0 %v1054
  %1469 = vmatpush.bf16.msra.mxu0 %v1052
  %1470 = vmatpush.bf16.msra.mxu0 %v1050
  %1471 = vmatpush.bf16.msra.mxu0 %v1048
  %1472 = vmatpush.bf16.msra.mxu0 %v1046
  %1473 = vmatmul.bf16.gmra.mxu0 %v431
  %v1474 = vpop.f32.mrf.mxu0
  %v1475 = vadd.f32 %v1456, %v1474
  %v1476 = vpop.f32.mrf.mxu0
  %v1477 = vadd.f32 %v1458, %v1476
  %1478 = vmatmul.bf16.gmra.mxu0 %v432
  %v1479 = vpop.f32.mrf.mxu0
  %v1480 = vadd.f32 %v1461, %v1479
  %v1481 = vpop.f32.mrf.mxu0
  %v1482 = vadd.f32 %v1463, %v1481
  %1483 = vdwg.mxu0
  %1484 = vmatpush.bf16.msra.mxu0 %v1076
  %1485 = vmatpush.bf16.msra.mxu0 %v1074
  %1486 = vmatpush.bf16.msra.mxu0 %v1072
  %1487 = vmatpush.bf16.msra.mxu0 %v1070
  %1488 = vmatpush.bf16.msra.mxu0 %v1068
  %1489 = vmatpush.bf16.msra.mxu0 %v1066
  %1490 = vmatpush.bf16.msra.mxu0 %v1064
  %1491 = vmatpush.bf16.msra.mxu0 %v1062
  %1492 = vmatmul.bf16.gmra.mxu0 %v405
  %v1493 = vpop.f32.mrf.mxu0
  %v1494 = vadd.f32 %v1475, %v1493
  %v1495 = vpop.f32.mrf.mxu0
  %v1496 = vadd.f32 %v1477, %v1495
  %1497 = vmatmul.bf16.gmra.mxu0 %v406
  %v1498 = vpop.f32.mrf.mxu0
  %v1499 = vadd.f32 %v1480, %v1498
  %v1500 = vpop.f32.mrf.mxu0
  %v1501 = vadd.f32 %v1482, %v1500
  %1502 = vdwg.mxu0
  %1503 = vmatpush.bf16.msra.mxu0 %v1092
  %1504 = vmatpush.bf16.msra.mxu0 %v1090
  %1505 = vmatpush.bf16.msra.mxu0 %v1088
  %1506 = vmatpush.bf16.msra.mxu0 %v1086
  %1507 = vmatpush.bf16.msra.mxu0 %v1084
  %1508 = vmatpush.bf16.msra.mxu0 %v1082
  %1509 = vmatpush.bf16.msra.mxu0 %v1080
  %1510 = vmatpush.bf16.msra.mxu0 %v1078
  %1511 = vmatmul.bf16.gmra.mxu0 %v425
  %v1512 = vpop.f32.mrf.mxu0
  %v1513 = vadd.f32 %v1494, %v1512
  %v1514 = vpop.f32.mrf.mxu0
  %v1515 = vadd.f32 %v1496, %v1514
  %1516 = vmatmul.bf16.gmra.mxu0 %v426
  %v1517 = vpop.f32.mrf.mxu0
  %v1518 = vadd.f32 %v1499, %v1517
  %v1519 = vpop.f32.mrf.mxu0
  %v1520 = vadd.f32 %v1501, %v1519
  %1521 = vdwg.mxu0
  %1522 = vmatpush.bf16.msra.mxu0 %v1108
  %1523 = vmatpush.bf16.msra.mxu0 %v1106
  %1524 = vmatpush.bf16.msra.mxu0 %v1104
  %1525 = vmatpush.bf16.msra.mxu0 %v1102
  %1526 = vmatpush.bf16.msra.mxu0 %v1100
  %1527 = vmatpush.bf16.msra.mxu0 %v1098
  %1528 = vmatpush.bf16.msra.mxu0 %v1096
  %1529 = vmatpush.bf16.msra.mxu0 %v1094
  %1530 = vmatmul.bf16.gmra.mxu0 %v453
  %v1531 = vpop.f32.mrf.mxu0
  %v1532 = vadd.f32 %v1513, %v1531
  %v1533 = vpop.f32.mrf.mxu0
  %v1534 = vadd.f32 %v1515, %v1533
  %1535 = vmatmul.bf16.gmra.mxu0 %v454
  %v1536 = vpop.f32.mrf.mxu0
  %v1537 = vadd.f32 %v1518, %v1536
  %v1538 = vpop.f32.mrf.mxu0
  %v1539 = vadd.f32 %v1520, %v1538
  %1540 = vdwg.mxu0
  %v1541 = vmax.f32 %v1380, 0.0
  %v1542 = vmax.f32 %v1532, 0.0
  %v1543 = vmax.f32 %v1382, 0.0
  %v1544 = vmax.f32 %v1534, 0.0
  %v1545 = vmax.f32 %v1385, 0.0
  %v1546 = vmax.f32 %v1537, 0.0
  %v1547 = vmax.f32 %v1387, 0.0
  %v1548 = vmax.f32 %v1539, 0.0
  %v1549 = vpack.c.bf16 %v1542, %v1541
  %v1550 = vpack.c.bf16 %v1544, %v1543
  %v1551 = vpack.c.bf16 %v1546, %v1545
  %v1552 = vpack.c.bf16 %v1548, %v1547
  %v1554 = vunpack.c.h.b16 %v1549
  %v1555 = vpack.c.b16 %v1554, %v1554
  %v1560 = vunpack.c.h.b16 %v1550
  %v1561 = vunpack.c.h.b16 %v1551
  %v1562 = vunpack.c.h.b16 %v1552
  %v1563 = vpack.c.b16 %v1560, %v1554
  %v1564 = vpack.c.b16 %v1562, %v1561
  %v1566 = vshrl.u32 %v1563, 16
  %v1568 = vrot.slane %v1566, 7
  %v1569 = vshll.u32 %v1563, 16
  %v1571 = vor.u32 %v1568, %v1569
  %v1573 = vshrl.u32 %v1564, 16
  %v1575 = vrot.slane %v1573, 7
  %v1576 = vshll.u32 %v1564, 16
  %v1578 = vor.u32 %v1575, %v1576
  %v1579 = vsel %vm269, %v1568, %v1578
  %v1582 = vsel %vm288, %v1555, %v1571
  %v1583 = vsel %vm318, 0, %v1582
  %v1584 = vsel %vm325, 0, %v1579
  %v1585 = vunpack.c.l.b16 %v1549
  %v1586 = vunpack.c.l.b16 %v1550
  %v1587 = vunpack.c.l.b16 %v1551
  %v1588 = vunpack.c.l.b16 %v1552
  %v1589 = vpack.c.b16 %v1586, %v1585
  %v1590 = vpack.c.b16 %v1588, %v1587
  %v1592 = vshrl.u32 %v1589, 16
  %v1594 = vshll.u32 %v1589, 16
  %v1596 = vrot.slane %v1594, 1
  %v1597 = vor.u32 %v1592, %v1596
  %v1599 = vshll.u32 %v1590, 16
  %v1601 = vrot.slane %v1599, 1
  %v1602 = vsel %vm334, %v1597, %v1601
  %v1603 = vshrl.u32 %v1590, 16
  %v1605 = vor.u32 %v1603, %v1601
  %v1608 = vpack.c.b16 %v1588, %v1588
  %v1610 = vsel %vm355, %v1605, %v1608
  %v1611 = vsel %vm385, 0, %v1602
  %v1612 = vsel %vm392, 0, %v1610
  %v1617 = vld [vmem:[%s6] sm:$0xff]
  %v1618 = vld [vmem:[%s6 + $0x8] sm:$0xff]
  %v1619 = vld [vmem:[%s6 + $0x10] sm:$0xff]
  %v1620 = vld [vmem:[%s6 + $0x18] sm:$0xff]
  %v1621 = vld [vmem:[%s6 + $0x20] sm:$0xff]
  %v1622 = vld [vmem:[%s6 + $0x28] sm:$0xff]
  %v1623 = vld [vmem:[%s6 + $0x30] sm:$0xff]
  %v1624 = vld [vmem:[%s6 + $0x38] sm:$0xff]
  %v1625 = vld [vmem:[%s6 + $0x40] sm:$0xff]
  %v1626 = vld [vmem:[%s6 + $0x48] sm:$0xff]
  %v1627 = vld [vmem:[%s6 + $0x50] sm:$0xff]
  %v1628 = vld [vmem:[%s6 + $0x58] sm:$0xff]
  %v1629 = vld [vmem:[%s6 + $0x60] sm:$0xff]
  %v1630 = vld [vmem:[%s6 + $0x68] sm:$0xff]
  %v1631 = vld [vmem:[%s6 + $0x70] sm:$0xff]
  %v1632 = vld [vmem:[%s6 + $0x78] sm:$0xff]
  %v1633 = vld [vmem:[%s6 + $0x80] sm:$0xff]
  %v1634 = vld [vmem:[%s6 + $0x88] sm:$0xff]
  %v1635 = vld [vmem:[%s6 + $0x90] sm:$0xff]
  %v1636 = vld [vmem:[%s6 + $0x98] sm:$0xff]
  %v1637 = vld [vmem:[%s6 + $0xa0] sm:$0xff]
  %v1638 = vld [vmem:[%s6 + $0xa8] sm:$0xff]
  %v1639 = vld [vmem:[%s6 + $0xb0] sm:$0xff]
  %v1640 = vld [vmem:[%s6 + $0xb8] sm:$0xff]
  %v1641 = vld [vmem:[%s6 + $0xc0] sm:$0xff]
  %v1642 = vld [vmem:[%s6 + $0xc8] sm:$0xff]
  %v1643 = vld [vmem:[%s6 + $0xd0] sm:$0xff]
  %v1644 = vld [vmem:[%s6 + $0xd8] sm:$0xff]
  %v1645 = vld [vmem:[%s6 + $0xe0] sm:$0xff]
  %v1646 = vld [vmem:[%s6 + $0xe8] sm:$0xff]
  %v1647 = vld [vmem:[%s6 + $0xf0] sm:$0xff]
  %v1648 = vld [vmem:[%s6 + $0xf8] sm:$0xff]
  %v1649 = vld [vmem:[%s6 + $0x100] sm:$0xff]
  %v1650 = vld [vmem:[%s6 + $0x108] sm:$0xff]
  %v1651 = vld [vmem:[%s6 + $0x110] sm:$0xff]
  %v1652 = vld [vmem:[%s6 + $0x118] sm:$0xff]
  %v1653 = vld [vmem:[%s6 + $0x120] sm:$0xff]
  %v1654 = vld [vmem:[%s6 + $0x128] sm:$0xff]
  %v1655 = vld [vmem:[%s6 + $0x130] sm:$0xff]
  %v1656 = vld [vmem:[%s6 + $0x138] sm:$0xff]
  %v1657 = vld [vmem:[%s6 + $0x140] sm:$0xff]
  %v1658 = vld [vmem:[%s6 + $0x148] sm:$0xff]
  %v1659 = vld [vmem:[%s6 + $0x150] sm:$0xff]
  %v1660 = vld [vmem:[%s6 + $0x158] sm:$0xff]
  %v1661 = vld [vmem:[%s6 + $0x160] sm:$0xff]
  %v1662 = vld [vmem:[%s6 + $0x168] sm:$0xff]
  %v1663 = vld [vmem:[%s6 + $0x170] sm:$0xff]
  %v1664 = vld [vmem:[%s6 + $0x178] sm:$0xff]
  %v1665 = vld [vmem:[%s6 + $0x180] sm:$0xff]
  %v1666 = vld [vmem:[%s6 + $0x188] sm:$0xff]
  %v1667 = vld [vmem:[%s6 + $0x190] sm:$0xff]
  %v1668 = vld [vmem:[%s6 + $0x198] sm:$0xff]
  %v1669 = vld [vmem:[%s6 + $0x1a0] sm:$0xff]
  %v1670 = vld [vmem:[%s6 + $0x1a8] sm:$0xff]
  %v1671 = vld [vmem:[%s6 + $0x1b0] sm:$0xff]
  %v1672 = vld [vmem:[%s6 + $0x1b8] sm:$0xff]
  %v1673 = vld [vmem:[%s6 + $0x1c0] sm:$0xff]
  %v1674 = vld [vmem:[%s6 + $0x1c8] sm:$0xff]
  %v1675 = vld [vmem:[%s6 + $0x1d0] sm:$0xff]
  %v1676 = vld [vmem:[%s6 + $0x1d8] sm:$0xff]
  %v1677 = vld [vmem:[%s6 + $0x1e0] sm:$0xff]
  %v1678 = vld [vmem:[%s6 + $0x1e8] sm:$0xff]
  %v1679 = vld [vmem:[%s6 + $0x1f0] sm:$0xff]
  %v1680 = vld [vmem:[%s6 + $0x1f8] sm:$0xff]
  %v1681 = vld [vmem:[%s7] sm:$0x3]
  %v1683 = vperm.slane %v1681, 0
  %v1684 = vperm.slane %v1681, 1
  %v1751 = vunpack.c.l.b16 %v1617
  %v1752 = vunpack.c.h.b16 %v1617
  %v1753 = vunpack.c.l.b16 %v1618
  %v1754 = vunpack.c.h.b16 %v1618
  %v1755 = vunpack.c.l.b16 %v1619
  %v1756 = vunpack.c.h.b16 %v1619
  %v1757 = vunpack.c.l.b16 %v1620
  %v1758 = vunpack.c.h.b16 %v1620
  %v1759 = vunpack.c.l.b16 %v1621
  %v1760 = vunpack.c.h.b16 %v1621
  %v1761 = vunpack.c.l.b16 %v1622
  %v1762 = vunpack.c.h.b16 %v1622
  %v1763 = vunpack.c.l.b16 %v1623
  %v1764 = vunpack.c.h.b16 %v1623
  %v1765 = vunpack.c.l.b16 %v1624
  %v1766 = vunpack.c.h.b16 %v1624
  %v1767 = vunpack.c.l.b16 %v1625
  %v1768 = vunpack.c.h.b16 %v1625
  %v1769 = vunpack.c.l.b16 %v1626
  %v1770 = vunpack.c.h.b16 %v1626
  %v1771 = vunpack.c.l.b16 %v1627
  %v1772 = vunpack.c.h.b16 %v1627
  %v1773 = vunpack.c.l.b16 %v1628
  %v1774 = vunpack.c.h.b16 %v1628
  %v1775 = vunpack.c.l.b16 %v1629
  %v1776 = vunpack.c.h.b16 %v1629
  %v1777 = vunpack.c.l.b16 %v1630
  %v1778 = vunpack.c.h.b16 %v1630
  %v1779 = vunpack.c.l.b16 %v1631
  %v1780 = vunpack.c.h.b16 %v1631
  %v1781 = vunpack.c.l.b16 %v1632
  %v1782 = vunpack.c.h.b16 %v1632
  %v1783 = vunpack.c.l.b16 %v1633
  %v1784 = vunpack.c.h.b16 %v1633
  %v1785 = vunpack.c.l.b16 %v1634
  %v1786 = vunpack.c.h.b16 %v1634
  %v1787 = vunpack.c.l.b16 %v1635
  %v1788 = vunpack.c.h.b16 %v1635
  %v1789 = vunpack.c.l.b16 %v1636
  %v1790 = vunpack.c.h.b16 %v1636
  %v1791 = vunpack.c.l.b16 %v1637
  %v1792 = vunpack.c.h.b16 %v1637
  %v1793 = vunpack.c.l.b16 %v1638
  %v1794 = vunpack.c.h.b16 %v1638
  %v1795 = vunpack.c.l.b16 %v1639
  %v1796 = vunpack.c.h.b16 %v1639
  %v1797 = vunpack.c.l.b16 %v1640
  %v1798 = vunpack.c.h.b16 %v1640
  %v1799 = vunpack.c.l.b16 %v1641
  %v1800 = vunpack.c.h.b16 %v1641
  %v1801 = vunpack.c.l.b16 %v1642
  %v1802 = vunpack.c.h.b16 %v1642
  %v1803 = vunpack.c.l.b16 %v1643
  %v1804 = vunpack.c.h.b16 %v1643
  %v1805 = vunpack.c.l.b16 %v1644
  %v1806 = vunpack.c.h.b16 %v1644
  %v1807 = vunpack.c.l.b16 %v1645
  %v1808 = vunpack.c.h.b16 %v1645
  %v1809 = vunpack.c.l.b16 %v1646
  %v1810 = vunpack.c.h.b16 %v1646
  %v1811 = vunpack.c.l.b16 %v1647
  %v1812 = vunpack.c.h.b16 %v1647
  %v1813 = vunpack.c.l.b16 %v1648
  %v1814 = vunpack.c.h.b16 %v1648
  %v1815 = vunpack.c.l.b16 %v1649
  %v1816 = vunpack.c.h.b16 %v1649
  %v1817 = vunpack.c.l.b16 %v1650
  %v1818 = vunpack.c.h.b16 %v1650
  %v1819 = vunpack.c.l.b16 %v1651
  %v1820 = vunpack.c.h.b16 %v1651
  %v1821 = vunpack.c.l.b16 %v1652
  %v1822 = vunpack.c.h.b16 %v1652
  %v1823 = vunpack.c.l.b16 %v1653
  %v1824 = vunpack.c.h.b16 %v1653
  %v1825 = vunpack.c.l.b16 %v1654
  %v1826 = vunpack.c.h.b16 %v1654
  %v1827 = vunpack.c.l.b16 %v1655
  %v1828 = vunpack.c.h.b16 %v1655
  %v1829 = vunpack.c.l.b16 %v1656
  %v1830 = vunpack.c.h.b16 %v1656
  %v1831 = vunpack.c.l.b16 %v1657
  %v1832 = vunpack.c.h.b16 %v1657
  %v1833 = vunpack.c.l.b16 %v1658
  %v1834 = vunpack.c.h.b16 %v1658
  %v1835 = vunpack.c.l.b16 %v1659
  %v1836 = vunpack.c.h.b16 %v1659
  %v1837 = vunpack.c.l.b16 %v1660
  %v1838 = vunpack.c.h.b16 %v1660
  %v1839 = vunpack.c.l.b16 %v1661
  %v1840 = vunpack.c.h.b16 %v1661
  %v1841 = vunpack.c.l.b16 %v1662
  %v1842 = vunpack.c.h.b16 %v1662
  %v1843 = vunpack.c.l.b16 %v1663
  %v1844 = vunpack.c.h.b16 %v1663
  %v1845 = vunpack.c.l.b16 %v1664
  %v1846 = vunpack.c.h.b16 %v1664
  %v1847 = vunpack.c.l.b16 %v1665
  %v1848 = vunpack.c.h.b16 %v1665
  %v1849 = vunpack.c.l.b16 %v1666
  %v1850 = vunpack.c.h.b16 %v1666
  %v1851 = vunpack.c.l.b16 %v1667
  %v1852 = vunpack.c.h.b16 %v1667
  %v1853 = vunpack.c.l.b16 %v1668
  %v1854 = vunpack.c.h.b16 %v1668
  %v1855 = vunpack.c.l.b16 %v1669
  %v1856 = vunpack.c.h.b16 %v1669
  %v1857 = vunpack.c.l.b16 %v1670
  %v1858 = vunpack.c.h.b16 %v1670
  %v1859 = vunpack.c.l.b16 %v1671
  %v1860 = vunpack.c.h.b16 %v1671
  %v1861 = vunpack.c.l.b16 %v1672
  %v1862 = vunpack.c.h.b16 %v1672
  %v1863 = vunpack.c.l.b16 %v1673
  %v1864 = vunpack.c.h.b16 %v1673
  %v1865 = vunpack.c.l.b16 %v1674
  %v1866 = vunpack.c.h.b16 %v1674
  %v1867 = vunpack.c.l.b16 %v1675
  %v1868 = vunpack.c.h.b16 %v1675
  %v1869 = vunpack.c.l.b16 %v1676
  %v1870 = vunpack.c.h.b16 %v1676
  %v1871 = vunpack.c.l.b16 %v1677
  %v1872 = vunpack.c.h.b16 %v1677
  %v1873 = vunpack.c.l.b16 %v1678
  %v1874 = vunpack.c.h.b16 %v1678
  %v1875 = vunpack.c.l.b16 %v1679
  %v1876 = vunpack.c.h.b16 %v1679
  %v1877 = vunpack.c.l.b16 %v1680
  %v1878 = vunpack.c.h.b16 %v1680
  %v1879 = vpack.c.b16 %v1753, %v1751
  %v1880 = vpack.c.b16 %v1754, %v1752
  %v1881 = vpack.c.b16 %v1757, %v1755
  %v1882 = vpack.c.b16 %v1758, %v1756
  %v1883 = vpack.c.b16 %v1761, %v1759
  %v1884 = vpack.c.b16 %v1762, %v1760
  %v1885 = vpack.c.b16 %v1765, %v1763
  %v1886 = vpack.c.b16 %v1766, %v1764
  %v1887 = vpack.c.b16 %v1769, %v1767
  %v1888 = vpack.c.b16 %v1770, %v1768
  %v1889 = vpack.c.b16 %v1773, %v1771
  %v1890 = vpack.c.b16 %v1774, %v1772
  %v1891 = vpack.c.b16 %v1777, %v1775
  %v1892 = vpack.c.b16 %v1778, %v1776
  %v1893 = vpack.c.b16 %v1781, %v1779
  %v1894 = vpack.c.b16 %v1782, %v1780
  %v1895 = vpack.c.b16 %v1785, %v1783
  %v1896 = vpack.c.b16 %v1786, %v1784
  %v1897 = vpack.c.b16 %v1789, %v1787
  %v1898 = vpack.c.b16 %v1790, %v1788
  %v1899 = vpack.c.b16 %v1793, %v1791
  %v1900 = vpack.c.b16 %v1794, %v1792
  %v1901 = vpack.c.b16 %v1797, %v1795
  %v1902 = vpack.c.b16 %v1798, %v1796
  %v1903 = vpack.c.b16 %v1801, %v1799
  %v1904 = vpack.c.b16 %v1802, %v1800
  %v1905 = vpack.c.b16 %v1805, %v1803
  %v1906 = vpack.c.b16 %v1806, %v1804
  %v1907 = vpack.c.b16 %v1809, %v1807
  %v1908 = vpack.c.b16 %v1810, %v1808
  %v1909 = vpack.c.b16 %v1813, %v1811
  %v1910 = vpack.c.b16 %v1814, %v1812
  %v1911 = vpack.c.b16 %v1817, %v1815
  %v1912 = vpack.c.b16 %v1818, %v1816
  %v1913 = vpack.c.b16 %v1821, %v1819
  %v1914 = vpack.c.b16 %v1822, %v1820
  %v1915 = vpack.c.b16 %v1825, %v1823
  %v1916 = vpack.c.b16 %v1826, %v1824
  %v1917 = vpack.c.b16 %v1829, %v1827
  %v1918 = vpack.c.b16 %v1830, %v1828
  %v1919 = vpack.c.b16 %v1833, %v1831
  %v1920 = vpack.c.b16 %v1834, %v1832
  %v1921 = vpack.c.b16 %v1837, %v1835
  %v1922 = vpack.c.b16 %v1838, %v1836
  %v1923 = vpack.c.b16 %v1841, %v1839
  %v1924 = vpack.c.b16 %v1842, %v1840
  %v1925 = vpack.c.b16 %v1845, %v1843
  %v1926 = vpack.c.b16 %v1846, %v1844
  %v1927 = vpack.c.b16 %v1849, %v1847
  %v1928 = vpack.c.b16 %v1850, %v1848
  %v1929 = vpack.c.b16 %v1853, %v1851
  %v1930 = vpack.c.b16 %v1854, %v1852
  %v1931 = vpack.c.b16 %v1857, %v1855
  %v1932 = vpack.c.b16 %v1858, %v1856
  %v1933 = vpack.c.b16 %v1861, %v1859
  %v1934 = vpack.c.b16 %v1862, %v1860
  %v1935 = vpack.c.b16 %v1865, %v1863
  %v1936 = vpack.c.b16 %v1866, %v1864
  %v1937 = vpack.c.b16 %v1869, %v1867
  %v1938 = vpack.c.b16 %v1870, %v1868
  %v1939 = vpack.c.b16 %v1873, %v1871
  %v1940 = vpack.c.b16 %v1874, %v1872
  %v1941 = vpack.c.b16 %v1877, %v1875
  %v1942 = vpack.c.b16 %v1878, %v1876
  %2007 = vmatpush.bf16.msra.mxu0 %v1893
  %2008 = vmatpush.bf16.msra.mxu0 %v1891
  %2009 = vmatpush.bf16.msra.mxu0 %v1889
  %2010 = vmatpush.bf16.msra.mxu0 %v1887
  %2011 = vmatpush.bf16.msra.mxu0 %v1885
  %2012 = vmatpush.bf16.msra.mxu0 %v1883
  %2013 = vmatpush.bf16.msra.mxu0 %v1881
  %2014 = vmatpush.bf16.msra.mxu0 %v1879
  %2015 = vmatmul.bf16.gmra.mxu0 %v1589
  %v2016 = vpop.f32.mrf.mxu0
  %v2017 = vadd.f32 %v1683, %v2016
  %v2018 = vpop.f32.mrf.mxu0
  %v2019 = vadd.f32 %v1683, %v2018
  %2020 = vmatmul.bf16.gmra.mxu0 %v1590
  %v2021 = vpop.f32.mrf.mxu0
  %v2022 = vadd.f32 %v1683, %v2021
  %v2023 = vpop.f32.mrf.mxu0
  %v2024 = vadd.f32 %v1683, %v2023
  %2025 = vdwg.mxu0
  %2026 = vmatpush.bf16.msra.mxu0 %v1909
  %2027 = vmatpush.bf16.msra.mxu0 %v1907
  %2028 = vmatpush.bf16.msra.mxu0 %v1905
  %2029 = vmatpush.bf16.msra.mxu0 %v1903
  %2030 = vmatpush.bf16.msra.mxu0 %v1901
  %2031 = vmatpush.bf16.msra.mxu0 %v1899
  %2032 = vmatpush.bf16.msra.mxu0 %v1897
  %2033 = vmatpush.bf16.msra.mxu0 %v1895
  %2034 = vmatmul.bf16.gmra.mxu0 %v1563
  %v2035 = vpop.f32.mrf.mxu0
  %v2036 = vadd.f32 %v2017, %v2035
  %v2037 = vpop.f32.mrf.mxu0
  %v2038 = vadd.f32 %v2019, %v2037
  %2039 = vmatmul.bf16.gmra.mxu0 %v1564
  %v2040 = vpop.f32.mrf.mxu0
  %v2041 = vadd.f32 %v2022, %v2040
  %v2042 = vpop.f32.mrf.mxu0
  %v2043 = vadd.f32 %v2024, %v2042
  %2044 = vdwg.mxu0
  %2045 = vmatpush.bf16.msra.mxu0 %v1925
  %2046 = vmatpush.bf16.msra.mxu0 %v1923
  %2047 = vmatpush.bf16.msra.mxu0 %v1921
  %2048 = vmatpush.bf16.msra.mxu0 %v1919
  %2049 = vmatpush.bf16.msra.mxu0 %v1917
  %2050 = vmatpush.bf16.msra.mxu0 %v1915
  %2051 = vmatpush.bf16.msra.mxu0 %v1913
  %2052 = vmatpush.bf16.msra.mxu0 %v1911
  %2053 = vmatmul.bf16.gmra.mxu0 %v1583
  %v2054 = vpop.f32.mrf.mxu0
  %v2055 = vadd.f32 %v2036, %v2054
  %v2056 = vpop.f32.mrf.mxu0
  %v2057 = vadd.f32 %v2038, %v2056
  %2058 = vmatmul.bf16.gmra.mxu0 %v1584
  %v2059 = vpop.f32.mrf.mxu0
  %v2060 = vadd.f32 %v2041, %v2059
  %v2061 = vpop.f32.mrf.mxu0
  %v2062 = vadd.f32 %v2043, %v2061
  %2063 = vdwg.mxu0
  %2064 = vmatpush.bf16.msra.mxu0 %v1941
  %2065 = vmatpush.bf16.msra.mxu0 %v1939
  %2066 = vmatpush.bf16.msra.mxu0 %v1937
  %2067 = vmatpush.bf16.msra.mxu0 %v1935
  %2068 = vmatpush.bf16.msra.mxu0 %v1933
  %2069 = vmatpush.bf16.msra.mxu0 %v1931
  %2070 = vmatpush.bf16.msra.mxu0 %v1929
  %2071 = vmatpush.bf16.msra.mxu0 %v1927
  %2072 = vmatmul.bf16.gmra.mxu0 %v1611
  %v2073 = vpop.f32.mrf.mxu0
  %v2074 = vadd.f32 %v2055, %v2073
  %v2075 = vpop.f32.mrf.mxu0
  %v2076 = vadd.f32 %v2057, %v2075
  %2077 = vmatmul.bf16.gmra.mxu0 %v1612
  %v2078 = vpop.f32.mrf.mxu0
  %v2079 = vadd.f32 %v2060, %v2078
  %v2080 = vpop.f32.mrf.mxu0
  %v2081 = vadd.f32 %v2062, %v2080
  %2082 = vdwg.mxu0
  %2083 = vmatpush.bf16.msra.mxu0 %v1894
  %2084 = vmatpush.bf16.msra.mxu0 %v1892
  %2085 = vmatpush.bf16.msra.mxu0 %v1890
  %2086 = vmatpush.bf16.msra.mxu0 %v1888
  %2087 = vmatpush.bf16.msra.mxu0 %v1886
  %2088 = vmatpush.bf16.msra.mxu0 %v1884
  %2089 = vmatpush.bf16.msra.mxu0 %v1882
  %2090 = vmatpush.bf16.msra.mxu0 %v1880
  %2091 = vmatmul.bf16.gmra.mxu0 %v1589
  %v2092 = vpop.f32.mrf.mxu0
  %v2093 = vadd.f32 %v1684, %v2092
  %v2094 = vpop.f32.mrf.mxu0
  %v2095 = vadd.f32 %v1684, %v2094
  %2096 = vmatmul.bf16.gmra.mxu0 %v1590
  %v2097 = vpop.f32.mrf.mxu0
  %v2098 = vadd.f32 %v1684, %v2097
  %v2099 = vpop.f32.mrf.mxu0
  %v2100 = vadd.f32 %v1684, %v2099
  %2101 = vdwg.mxu0
  %2102 = vmatpush.bf16.msra.mxu0 %v1910
  %2103 = vmatpush.bf16.msra.mxu0 %v1908
  %2104 = vmatpush.bf16.msra.mxu0 %v1906
  %2105 = vmatpush.bf16.msra.mxu0 %v1904
  %2106 = vmatpush.bf16.msra.mxu0 %v1902
  %2107 = vmatpush.bf16.msra.mxu0 %v1900
  %2108 = vmatpush.bf16.msra.mxu0 %v1898
  %2109 = vmatpush.bf16.msra.mxu0 %v1896
  %2110 = vmatmul.bf16.gmra.mxu0 %v1563
  %v2111 = vpop.f32.mrf.mxu0
  %v2112 = vadd.f32 %v2093, %v2111
  %v2113 = vpop.f32.mrf.mxu0
  %v2114 = vadd.f32 %v2095, %v2113
  %2115 = vmatmul.bf16.gmra.mxu0 %v1564
  %v2116 = vpop.f32.mrf.mxu0
  %v2117 = vadd.f32 %v2098, %v2116
  %v2118 = vpop.f32.mrf.mxu0
  %v2119 = vadd.f32 %v2100, %v2118
  %2120 = vdwg.mxu0
  %2121 = vmatpush.bf16.msra.mxu0 %v1926
  %2122 = vmatpush.bf16.msra.mxu0 %v1924
  %2123 = vmatpush.bf16.msra.mxu0 %v1922
  %2124 = vmatpush.bf16.msra.mxu0 %v1920
  %2125 = vmatpush.bf16.msra.mxu0 %v1918
  %2126 = vmatpush.bf16.msra.mxu0 %v1916
  %2127 = vmatpush.bf16.msra.mxu0 %v1914
  %2128 = vmatpush.bf16.msra.mxu0 %v1912
  %2129 = vmatmul.bf16.gmra.mxu0 %v1583
  %v2130 = vpop.f32.mrf.mxu0
  %v2131 = vadd.f32 %v2112, %v2130
  %v2132 = vpop.f32.mrf.mxu0
  %v2133 = vadd.f32 %v2114, %v2132
  %2134 = vmatmul.bf16.gmra.mxu0 %v1584
  %v2135 = vpop.f32.mrf.mxu0
  %v2136 = vadd.f32 %v2117, %v2135
  %v2137 = vpop.f32.mrf.mxu0
  %v2138 = vadd.f32 %v2119, %v2137
  %2139 = vdwg.mxu0
  %2140 = vmatpush.bf16.msra.mxu0 %v1942
  %2141 = vmatpush.bf16.msra.mxu0 %v1940
  %2142 = vmatpush.bf16.msra.mxu0 %v1938
  %2143 = vmatpush.bf16.msra.mxu0 %v1936
  %2144 = vmatpush.bf16.msra.mxu0 %v1934
  %2145 = vmatpush.bf16.msra.mxu0 %v1932
  %2146 = vmatpush.bf16.msra.mxu0 %v1930
  %2147 = vmatpush.bf16.msra.mxu0 %v1928
  %2148 = vmatmul.bf16.gmra.mxu0 %v1611
  %v2149 = vpop.f32.mrf.mxu0
  %v2150 = vadd.f32 %v2131, %v2149
  %v2151 = vpop.f32.mrf.mxu0
  %v2152 = vadd.f32 %v2133, %v2151
  %2153 = vmatmul.bf16.gmra.mxu0 %v1612
  %v2154 = vpop.f32.mrf.mxu0
  %v2155 = vadd.f32 %v2136, %v2154
  %v2156 = vpop.f32.mrf.mxu0
  %v2157 = vadd.f32 %v2138, %v2156
  %2158 = vdwg.mxu0
  %v2159 = vmax.f32 %v2074, 0.0
  %v2160 = vmax.f32 %v2150, 0.0
  %v2161 = vmax.f32 %v2076, 0.0
  %v2162 = vmax.f32 %v2152, 0.0
  %v2163 = vmax.f32 %v2079, 0.0
  %v2164 = vmax.f32 %v2155, 0.0
  %v2165 = vmax.f32 %v2081, 0.0
  %v2166 = vmax.f32 %v2157, 0.0
  %2167 = vst [vmem:[%s8] sm:$0xff] %v2159
  %2168 = vst [vmem:[%s8 + $0x8] sm:$0xff] %v2160
  %2169 = vst [vmem:[%s8 + $0x10] sm:$0xff] %v2161
  %2170 = vst [vmem:[%s8 + $0x18] sm:$0xff] %v2162
  %2171 = vst [vmem:[%s8 + $0x20] sm:$0xff] %v2163
  %2172 = vst [vmem:[%s8 + $0x28] sm:$0xff] %v2164
  %2173 = vst [vmem:[%s8 + $0x30] sm:$0xff] %v2165
  %2174 = vst [vmem:[%s8 + $0x38] sm:$0xff] %v2166
  // Predicated region
  $region34: #{decoder_block_pallas.1} parent=0 // pred_check
    _
  $region35: #{decoder_block_pallas.1} parent=0 // pred_check_branch
    %2176 = sbr.rel (0) target = $region37
  $region36: #{decoder_block_pallas.1} parent=0 // pred_region
    _
  $region37: #{decoder_block_pallas.1} parent=0 // pred_fallthru
    _
  // Predicated region
  $region38: #{decoder_block_pallas.1} parent=0 // pred_check
    _
  $region39: #{decoder_block_pallas.1} parent=0 // pred_check_branch
    %2178 = sbr.rel (0) target = $region41
  $region40: #{decoder_block_pallas.1} parent=0 // pred_region
    _
  $region41: #{decoder_block_pallas.1} parent=0 // pred_fallthru
    _

</llo_original>
